<compile_context>
chip_gen: v6e
topology: v6e:2x2x1
jax: 0.10.0
libtpu: 0.0.40
codegen_flags: <defaults>
</compile_context>

<pallas_src>
import jax
import jax.numpy as jnp
from jax.experimental import pallas as pl
from jax.experimental.pallas import tpu as pltpu

NUM_CLASSES = 7
NUM_LAYERS = 2
HIDDEN = 64                 # H
CONV_SIZE = 21              # LSTM input feature size
EPS = 1e-5                  # BatchNorm1d default eps

OUT_W = 16                  # merged lane-padded output width
ANOM_LO, ANOM_HI = 8, 10    # anomaly head columns inside the merged output


def lstm_head_kernel(x_ref, h0_ref, c0_ref, h1_ref, c1_ref,
                     wih0_ref, b0_ref, whh0_ref, w1cat_ref, b1_ref,
                     whead_ref, bhead_ref, out_ref):
    H = HIDDEN
    B = out_ref.shape[0]
    xtb = x_ref[...]                          # (T*B, F) time-major rows
    TB = xtb.shape[0]
    T = TB // B

    # ---- hoisted layer-0 input projection: ONE matmul for all time steps ----
    xp = jnp.dot(xtb.astype(jnp.bfloat16), wih0_ref[...],
                 preferred_element_type=jnp.float32) + b0_ref[...]   # (T*B, 4H)

    # state layout (B, 2H): layer-0 h valid in lanes 0:H; layer-1 h and both
    # cell states valid in lanes H:2H.  (Wrapper passes duplicated states, so
    # both halves are valid initially.)
    h0 = h0_ref[...]
    c0 = c0_ref[...]
    h1 = h1_ref[...]
    c1 = c1_ref[...]

    whh0 = whh0_ref[...]                      # (2H, 4H) bf16, rows H:2H are zero
    w1c = w1cat_ref[...]                      # (2H, 4H) bf16 = [Wih1 ; Whh1]
    b1 = b1_ref[...]                          # (1, 4H) f32

    # hoisted lane masks / activation constants
    lane_g = jax.lax.broadcasted_iota(jnp.int32, (B, 4 * H), 1)
    is_g = (lane_g >= 2 * H) & (lane_g < 3 * H)          # tanh-gate lanes
    gscale = jnp.where(is_g, 1.0, 0.5).astype(jnp.float32)
    goff = jnp.where(is_g, 0.0, 0.5).astype(jnp.float32)
    lane_h = jax.lax.broadcasted_iota(jnp.int32, (B, 2 * H), 1)
    lo = lane_h < H                                      # low half of the state

    def cell(gates, c_state, out_lo):
        """PyTorch LSTM cell (gate order i, f, g, o), single EUP pass for gates.

        gates: (B, 4H) f32.  c_state: (B, 2H) with c valid in lanes H:2H.
        Returns (h, c_next): h valid in lanes 0:H if out_lo else lanes H:2H;
        c_next valid in lanes H:2H.  Only vreg-aligned slices + XLU rolls.
        """
        # sigmoid(x) = 0.5*tanh(0.5*x)+0.5 -> one tanh pass over all 4 gates.
        act = jnp.tanh(gates * gscale) * gscale + goff
        left = act[:, :2 * H]            # [sig(i) | sig(f)]      (vreg-aligned)
        right = act[:, 2 * H:]           # [tanh(g) | sig(o)]     (vreg-aligned)
        p_in = left * right              # lanes 0:H  -> sig(i)*tanh(g)
        p_f = left * c_state             # lanes H:2H -> sig(f)*c
        csum = p_in + pltpu.roll(p_f, shift=H, axis=1)    # lanes 0:H -> c_new
        c_next = pltpu.roll(csum, shift=H, axis=1)        # lanes H:2H -> c_new
        tanh_c = jnp.tanh(csum)                           # lanes 0:H -> tanh(c_new)
        if out_lo:
            h = pltpu.roll(right, shift=H, axis=1) * tanh_c          # lanes 0:H
        else:
            h = right * pltpu.roll(tanh_c, shift=H, axis=1)          # lanes H:2H
        return h, c_next

    # 2-layer stacked LSTM, statically unrolled (T is small & fixed).
    # TODO(synk): if T ever grows, switch to lax.fori_loop(..., unroll=k).
    for t in range(T):
        # layer 0: only the recurrent matmul is on the serial chain
        g0 = xp[t * B:(t + 1) * B, :] + jnp.dot(
            h0.astype(jnp.bfloat16), whh0, preferred_element_type=jnp.float32)
        h0, c0 = cell(g0, c0, out_lo=True)
        # layer 1: fused input+recurrent dot on [h0_new | h1_old]
        hcat = jnp.where(lo, h0, h1)
        g1 = jnp.dot(hcat.astype(jnp.bfloat16), w1c,
                     preferred_element_type=jnp.float32) + b1
        h1, c1 = cell(g1, c1, out_lo=False)

    # ---- folded head: linear1∘linear2∘{Diog,Dect} composed into one matmul ----
    # (valid: the torch forward has no activation between these linears;
    #  w_head rows 0:H are zero since h1 is valid in lanes H:2H)
    head = jnp.dot(h1, whead_ref[...],
                   preferred_element_type=jnp.float32) + bhead_ref[...]  # (B, 16)

    # BatchNorm1d(1) in training mode: batch statistics over (B, L), biased var,
    # affine weight=1 / bias=0 (default init). Applied per head via lane masks.
    col = jax.lax.broadcasted_iota(jnp.int32, (B, OUT_W), 1)
    is_t = col < NUM_CLASSES
    is_a = (col >= ANOM_LO) & (col < ANOM_HI)
    mt = is_t.astype(jnp.float32)
    ma = is_a.astype(jnp.float32)
    n_t = float(B * NUM_CLASSES)
    n_a = float(B * 2)

    mean_t = jnp.sum(head * mt) / n_t
    mean_a = jnp.sum(head * ma) / n_a
    var_t = jnp.sum(((head - mean_t) ** 2) * mt) / n_t
    var_a = jnp.sum(((head - mean_a) ** 2) * ma) / n_a
    inv_t = jax.lax.rsqrt(var_t + EPS)
    inv_a = jax.lax.rsqrt(var_a + EPS)

    mean = jnp.where(is_t, mean_t, mean_a)
    inv = jnp.where(is_t, inv_t, inv_a)
    out_ref[...] = (head - mean) * inv * (mt + ma)       # one lane-padded store


def lstm_forward(x, params, h0, c0):
    """x: (B, T, F) batch-first f32; h0/c0: (num_layers, B, H) f32."""
    B, T, F = x.shape
    # layout glue: time-major rows for the hoisted projection, duplicated states
    x_tb = jnp.transpose(x, (1, 0, 2)).reshape(T * B, F)
    dup = lambda s: jnp.concatenate([s, s], axis=-1)     # (B, H) -> (B, 2H)
    inputs = (x_tb, dup(h0[0]), dup(c0[0]), dup(h0[1]), dup(c0[1])) + params

    merged = pl.pallas_call(
        lstm_head_kernel,
        out_shape=jax.ShapeDtypeStruct((B, OUT_W), jnp.float32),
        in_specs=[pl.BlockSpec(memory_space=pltpu.MemorySpace.VMEM)] * len(inputs),
        out_specs=pl.BlockSpec(memory_space=pltpu.MemorySpace.VMEM),
    )(*inputs)

    out_type = merged[:, :NUM_CLASSES]
    out_anom = merged[:, ANOM_LO:ANOM_HI]
    return out_type, out_anom


def init_params(key):
    """Deterministic params mirroring PyTorch default init shapes/scales, packed
    into the fused kernel layouts (all packing is one-time host-side glue)."""
    H, F = HIDDEN, CONV_SIZE
    ks = jax.random.split(key, 16)

    def u(k, shape, s):
        return jax.random.uniform(k, shape, jnp.float32, -s, s)

    s_lstm = H ** -0.5
    wih0 = u(ks[0], (4 * H, F), s_lstm)
    whh0 = u(ks[1], (4 * H, H), s_lstm)
    bih0 = u(ks[2], (4 * H,), s_lstm)
    bhh0 = u(ks[3], (4 * H,), s_lstm)
    wih1 = u(ks[4], (4 * H, H), s_lstm)
    whh1 = u(ks[5], (4 * H, H), s_lstm)
    bih1 = u(ks[6], (4 * H,), s_lstm)
    bhh1 = u(ks[7], (4 * H,), s_lstm)

    def lin(k1, k2, fan_in, fan_out):
        s = fan_in ** -0.5
        return u(k1, (fan_out, fan_in), s), u(k2, (fan_out,), s)

    w1, b1 = lin(ks[8], ks[9], H, H // 2)
    w2, b2 = lin(ks[10], ks[11], H // 2, H // 4)
    wd, bd = lin(ks[12], ks[13], H // 4, NUM_CLASSES)
    wa, ba = lin(ks[14], ks[15], H // 4, 2)

    # --- LSTM packing (bf16 matmul weights, f32 biases) ---
    wih0_t = wih0.T.astype(jnp.bfloat16)                               # (F, 4H)
    b0_row = (bih0 + bhh0)[None, :]                                    # (1, 4H)
    whh0_pad = jnp.concatenate(                                        # (2H, 4H)
        [whh0.T, jnp.zeros((H, 4 * H), jnp.float32)], axis=0).astype(jnp.bfloat16)
    w1_cat = jnp.concatenate([wih1.T, whh1.T], axis=0).astype(jnp.bfloat16)
    b1_row = (bih1 + bhh1)[None, :]                                    # (1, 4H)

    # --- fold the activation-free head: 64 -> {7, 2} in one (2H, 16) matmul ---
    m12 = w1.T @ w2.T                                                  # (H, 16)
    wt = m12 @ wd.T                                                    # (H, 7)
    wa_f = m12 @ wa.T                                                  # (H, 2)
    bt = b1 @ w2.T @ wd.T + b2 @ wd.T + bd                             # (7,)
    ba_f = b1 @ w2.T @ wa.T + b2 @ wa.T + ba                           # (2,)

    # h1 is kept in lanes H:2H inside the kernel -> head weights live in rows H:2H.
    w_head = jnp.zeros((2 * H, OUT_W), jnp.float32)                    # rows 0:H = 0
    w_head = w_head.at[H:, 0:NUM_CLASSES].set(wt)
    w_head = w_head.at[H:, ANOM_LO:ANOM_HI].set(wa_f)
    b_head = jnp.zeros((1, OUT_W), jnp.float32)
    b_head = b_head.at[0, 0:NUM_CLASSES].set(bt)
    b_head = b_head.at[0, ANOM_LO:ANOM_HI].set(ba_f)

    return (wih0_t, b0_row, whh0_pad, w1_cat, b1_row, w_head, b_head)


if __name__ == "__main__":
    key = jax.random.PRNGKey(0)
    kx, kh, kc, kp = jax.random.split(key, 4)

    B, T = 4, 8
    x = jax.random.normal(kx, (B, T, CONV_SIZE), jnp.float32)
    # TODO(synk): PyTorch forward draws fresh torch.randn h0/c0 every call;
    # here they are deterministic draws from PRNGKey(0).
    h0 = jax.random.normal(kh, (NUM_LAYERS, B, HIDDEN), jnp.float32)
    c0 = jax.random.normal(kc, (NUM_LAYERS, B, HIDDEN), jnp.float32)
    params = init_params(kp)

    out_type, out_anom = lstm_forward(x, params, h0, c0)
    jax.block_until_ready((out_type, out_anom))

    assert out_type.shape == (B, NUM_CLASSES)
    assert out_anom.shape == (B, 2)
    assert out_type.dtype == jnp.float32 and out_anom.dtype == jnp.float32
    assert bool(jnp.all(jnp.isfinite(out_type))) and bool(jnp.all(jnp.isfinite(out_anom)))
    print("KERNEL_OK")
</pallas_src>

<mosaic_0001>
module attributes {stable_mosaic.version = 11 : i64} {
  func.func @lstm_head_kernel(%arg0: memref<32x21xf32, #tpu.memory_space<vmem>>, %arg1: memref<4x128xf32, #tpu.memory_space<vmem>>, %arg2: memref<4x128xf32, #tpu.memory_space<vmem>>, %arg3: memref<4x128xf32, #tpu.memory_space<vmem>>, %arg4: memref<4x128xf32, #tpu.memory_space<vmem>>, %arg5: memref<21x256xbf16, #tpu.memory_space<vmem>>, %arg6: memref<1x256xf32, #tpu.memory_space<vmem>>, %arg7: memref<128x256xbf16, #tpu.memory_space<vmem>>, %arg8: memref<128x256xbf16, #tpu.memory_space<vmem>>, %arg9: memref<1x256xf32, #tpu.memory_space<vmem>>, %arg10: memref<128x16xf32, #tpu.memory_space<vmem>>, %arg11: memref<1x16xf32, #tpu.memory_space<vmem>>, %arg12: memref<4x16xf32, #tpu.memory_space<vmem>>) attributes {dimension_semantics = [], scalar_prefetch = 0 : i64, scratch_operands = 0 : i64, tpu.core_type = #tpu.core_type<tc>} {
    %c0 = arith.constant 0 : index
    %c0_0 = arith.constant 0 : index
    %0 = vector.load %arg0[%c0, %c0_0] : memref<32x21xf32, #tpu.memory_space<vmem>>, vector<32x21xf32>
    %1 = arith.truncf %0 : vector<32x21xf32> to vector<32x21xbf16>
    %c0_1 = arith.constant 0 : index
    %c0_2 = arith.constant 0 : index
    %2 = vector.load %arg5[%c0_1, %c0_2] : memref<21x256xbf16, #tpu.memory_space<vmem>>, vector<21x256xbf16>
    %cst = arith.constant dense<0.000000e+00> : vector<32x256xf32>
    %3 = tpu.matmul %1, %2, %cst {dimension_numbers = #tpu.dot_dimension_numbers<[1], [0], [0], [1], [0, 0, 1, 1], [], []>} : vector<32x21xbf16>, vector<21x256xbf16>, vector<32x256xf32> -> vector<32x256xf32>
    %c0_3 = arith.constant 0 : index
    %c0_4 = arith.constant 0 : index
    %4 = vector.load %arg6[%c0_3, %c0_4] : memref<1x256xf32, #tpu.memory_space<vmem>>, vector<1x256xf32>
    %5 = vector.broadcast %4 : vector<1x256xf32> to vector<32x256xf32>
    %6 = arith.addf %3, %5 : vector<32x256xf32>
    %c0_5 = arith.constant 0 : index
    %c0_6 = arith.constant 0 : index
    %7 = vector.load %arg1[%c0_5, %c0_6] : memref<4x128xf32, #tpu.memory_space<vmem>>, vector<4x128xf32>
    %c0_7 = arith.constant 0 : index
    %c0_8 = arith.constant 0 : index
    %8 = vector.load %arg2[%c0_7, %c0_8] : memref<4x128xf32, #tpu.memory_space<vmem>>, vector<4x128xf32>
    %c0_9 = arith.constant 0 : index
    %c0_10 = arith.constant 0 : index
    %9 = vector.load %arg3[%c0_9, %c0_10] : memref<4x128xf32, #tpu.memory_space<vmem>>, vector<4x128xf32>
    %c0_11 = arith.constant 0 : index
    %c0_12 = arith.constant 0 : index
    %10 = vector.load %arg4[%c0_11, %c0_12] : memref<4x128xf32, #tpu.memory_space<vmem>>, vector<4x128xf32>
    %c0_13 = arith.constant 0 : index
    %c0_14 = arith.constant 0 : index
    %11 = vector.load %arg7[%c0_13, %c0_14] : memref<128x256xbf16, #tpu.memory_space<vmem>>, vector<128x256xbf16>
    %c0_15 = arith.constant 0 : index
    %c0_16 = arith.constant 0 : index
    %12 = vector.load %arg8[%c0_15, %c0_16] : memref<128x256xbf16, #tpu.memory_space<vmem>>, vector<128x256xbf16>
    %c0_17 = arith.constant 0 : index
    %c0_18 = arith.constant 0 : index
    %13 = vector.load %arg9[%c0_17, %c0_18] : memref<1x256xf32, #tpu.memory_space<vmem>>, vector<1x256xf32>
    %14 = tpu.iota {dimensions = array<i32: 1>} : vector<4x256xi32>
    %c128_i32 = arith.constant 128 : i32
    %15 = vector.broadcast %c128_i32 : i32 to vector<4x256xi32>
    %16 = arith.cmpi sge, %14, %15 : vector<4x256xi32>
    %c192_i32 = arith.constant 192 : i32
    %17 = vector.broadcast %c192_i32 : i32 to vector<4x256xi32>
    %18 = arith.cmpi slt, %14, %17 : vector<4x256xi32>
    %19 = arith.andi %16, %18 : vector<4x256xi1>
    %cst_19 = arith.constant 1.000000e+00 : f32
    %cst_20 = arith.constant 5.000000e-01 : f32
    %20 = vector.broadcast %cst_19 : f32 to vector<4x256xf32>
    %21 = vector.broadcast %cst_20 : f32 to vector<4x256xf32>
    %22 = arith.select %19, %20, %21 : vector<4x256xi1>, vector<4x256xf32>
    %cst_21 = arith.constant 0.000000e+00 : f32
    %cst_22 = arith.constant 5.000000e-01 : f32
    %23 = vector.broadcast %cst_21 : f32 to vector<4x256xf32>
    %24 = vector.broadcast %cst_22 : f32 to vector<4x256xf32>
    %25 = arith.select %19, %23, %24 : vector<4x256xi1>, vector<4x256xf32>
    %26 = tpu.iota {dimensions = array<i32: 1>} : vector<4x128xi32>
    %c64_i32 = arith.constant 64 : i32
    %27 = vector.broadcast %c64_i32 : i32 to vector<4x128xi32>
    %28 = arith.cmpi slt, %26, %27 : vector<4x128xi32>
    %29 = vector.extract_strided_slice %6 {offsets = [0, 0], sizes = [4, 256], strides = [1, 1]} : vector<32x256xf32> to vector<4x256xf32>
    %30 = arith.truncf %7 : vector<4x128xf32> to vector<4x128xbf16>
    %cst_23 = arith.constant dense<0.000000e+00> : vector<4x256xf32>
    %31 = tpu.matmul %30, %11, %cst_23 {dimension_numbers = #tpu.dot_dimension_numbers<[1], [0], [0], [1], [0, 0, 1, 1], [], []>} : vector<4x128xbf16>, vector<128x256xbf16>, vector<4x256xf32> -> vector<4x256xf32>
    %32 = arith.addf %29, %31 : vector<4x256xf32>
    %33 = arith.mulf %32, %22 : vector<4x256xf32>
    %34 = math.tanh %33 : vector<4x256xf32>
    %35 = arith.mulf %34, %22 : vector<4x256xf32>
    %36 = arith.addf %35, %25 : vector<4x256xf32>
    %37 = vector.extract_strided_slice %36 {offsets = [0, 0], sizes = [4, 128], strides = [1, 1]} : vector<4x256xf32> to vector<4x128xf32>
    %38 = vector.extract_strided_slice %36 {offsets = [0, 128], sizes = [4, 128], strides = [1, 1]} : vector<4x256xf32> to vector<4x128xf32>
    %39 = arith.mulf %37, %38 : vector<4x128xf32>
    %40 = arith.mulf %37, %8 : vector<4x128xf32>
    %c64_i32_24 = arith.constant 64 : i32
    %41 = tpu.dynamic_rotate %40 by %c64_i32_24 dim 1 : vector<4x128xf32>, i32 -> vector<4x128xf32>
    %42 = arith.addf %39, %41 : vector<4x128xf32>
    %c64_i32_25 = arith.constant 64 : i32
    %43 = tpu.dynamic_rotate %42 by %c64_i32_25 dim 1 : vector<4x128xf32>, i32 -> vector<4x128xf32>
    %44 = math.tanh %42 : vector<4x128xf32>
    %c64_i32_26 = arith.constant 64 : i32
    %45 = tpu.dynamic_rotate %38 by %c64_i32_26 dim 1 : vector<4x128xf32>, i32 -> vector<4x128xf32>
    %46 = arith.mulf %45, %44 : vector<4x128xf32>
    %47 = arith.select %28, %46, %9 : vector<4x128xi1>, vector<4x128xf32>
    %48 = arith.truncf %47 : vector<4x128xf32> to vector<4x128xbf16>
    %cst_27 = arith.constant dense<0.000000e+00> : vector<4x256xf32>
    %49 = tpu.matmul %48, %12, %cst_27 {dimension_numbers = #tpu.dot_dimension_numbers<[1], [0], [0], [1], [0, 0, 1, 1], [], []>} : vector<4x128xbf16>, vector<128x256xbf16>, vector<4x256xf32> -> vector<4x256xf32>
    %50 = vector.broadcast %13 : vector<1x256xf32> to vector<4x256xf32>
    %51 = arith.addf %49, %50 : vector<4x256xf32>
    %52 = arith.mulf %51, %22 : vector<4x256xf32>
    %53 = math.tanh %52 : vector<4x256xf32>
    %54 = arith.mulf %53, %22 : vector<4x256xf32>
    %55 = arith.addf %54, %25 : vector<4x256xf32>
    %56 = vector.extract_strided_slice %55 {offsets = [0, 0], sizes = [4, 128], strides = [1, 1]} : vector<4x256xf32> to vector<4x128xf32>
    %57 = vector.extract_strided_slice %55 {offsets = [0, 128], sizes = [4, 128], strides = [1, 1]} : vector<4x256xf32> to vector<4x128xf32>
    %58 = arith.mulf %56, %57 : vector<4x128xf32>
    %59 = arith.mulf %56, %10 : vector<4x128xf32>
    %c64_i32_28 = arith.constant 64 : i32
    %60 = tpu.dynamic_rotate %59 by %c64_i32_28 dim 1 : vector<4x128xf32>, i32 -> vector<4x128xf32>
    %61 = arith.addf %58, %60 : vector<4x128xf32>
    %c64_i32_29 = arith.constant 64 : i32
    %62 = tpu.dynamic_rotate %61 by %c64_i32_29 dim 1 : vector<4x128xf32>, i32 -> vector<4x128xf32>
    %63 = math.tanh %61 : vector<4x128xf32>
    %c64_i32_30 = arith.constant 64 : i32
    %64 = tpu.dynamic_rotate %63 by %c64_i32_30 dim 1 : vector<4x128xf32>, i32 -> vector<4x128xf32>
    %65 = arith.mulf %57, %64 : vector<4x128xf32>
    %66 = vector.extract_strided_slice %6 {offsets = [4, 0], sizes = [4, 256], strides = [1, 1]} : vector<32x256xf32> to vector<4x256xf32>
    %67 = arith.truncf %46 : vector<4x128xf32> to vector<4x128xbf16>
    %cst_31 = arith.constant dense<0.000000e+00> : vector<4x256xf32>
    %68 = tpu.matmul %67, %11, %cst_31 {dimension_numbers = #tpu.dot_dimension_numbers<[1], [0], [0], [1], [0, 0, 1, 1], [], []>} : vector<4x128xbf16>, vector<128x256xbf16>, vector<4x256xf32> -> vector<4x256xf32>
    %69 = arith.addf %66, %68 : vector<4x256xf32>
    %70 = arith.mulf %69, %22 : vector<4x256xf32>
    %71 = math.tanh %70 : vector<4x256xf32>
    %72 = arith.mulf %71, %22 : vector<4x256xf32>
    %73 = arith.addf %72, %25 : vector<4x256xf32>
    %74 = vector.extract_strided_slice %73 {offsets = [0, 0], sizes = [4, 128], strides = [1, 1]} : vector<4x256xf32> to vector<4x128xf32>
    %75 = vector.extract_strided_slice %73 {offsets = [0, 128], sizes = [4, 128], strides = [1, 1]} : vector<4x256xf32> to vector<4x128xf32>
    %76 = arith.mulf %74, %75 : vector<4x128xf32>
    %77 = arith.mulf %74, %43 : vector<4x128xf32>
    %c64_i32_32 = arith.constant 64 : i32
    %78 = tpu.dynamic_rotate %77 by %c64_i32_32 dim 1 : vector<4x128xf32>, i32 -> vector<4x128xf32>
    %79 = arith.addf %76, %78 : vector<4x128xf32>
    %c64_i32_33 = arith.constant 64 : i32
    %80 = tpu.dynamic_rotate %79 by %c64_i32_33 dim 1 : vector<4x128xf32>, i32 -> vector<4x128xf32>
    %81 = math.tanh %79 : vector<4x128xf32>
    %c64_i32_34 = arith.constant 64 : i32
    %82 = tpu.dynamic_rotate %75 by %c64_i32_34 dim 1 : vector<4x128xf32>, i32 -> vector<4x128xf32>
    %83 = arith.mulf %82, %81 : vector<4x128xf32>
    %84 = arith.select %28, %83, %65 : vector<4x128xi1>, vector<4x128xf32>
    %85 = arith.truncf %84 : vector<4x128xf32> to vector<4x128xbf16>
    %cst_35 = arith.constant dense<0.000000e+00> : vector<4x256xf32>
    %86 = tpu.matmul %85, %12, %cst_35 {dimension_numbers = #tpu.dot_dimension_numbers<[1], [0], [0], [1], [0, 0, 1, 1], [], []>} : vector<4x128xbf16>, vector<128x256xbf16>, vector<4x256xf32> -> vector<4x256xf32>
    %87 = vector.broadcast %13 : vector<1x256xf32> to vector<4x256xf32>
    %88 = arith.addf %86, %87 : vector<4x256xf32>
    %89 = arith.mulf %88, %22 : vector<4x256xf32>
    %90 = math.tanh %89 : vector<4x256xf32>
    %91 = arith.mulf %90, %22 : vector<4x256xf32>
    %92 = arith.addf %91, %25 : vector<4x256xf32>
    %93 = vector.extract_strided_slice %92 {offsets = [0, 0], sizes = [4, 128], strides = [1, 1]} : vector<4x256xf32> to vector<4x128xf32>
    %94 = vector.extract_strided_slice %92 {offsets = [0, 128], sizes = [4, 128], strides = [1, 1]} : vector<4x256xf32> to vector<4x128xf32>
    %95 = arith.mulf %93, %94 : vector<4x128xf32>
    %96 = arith.mulf %93, %62 : vector<4x128xf32>
    %c64_i32_36 = arith.constant 64 : i32
    %97 = tpu.dynamic_rotate %96 by %c64_i32_36 dim 1 : vector<4x128xf32>, i32 -> vector<4x128xf32>
    %98 = arith.addf %95, %97 : vector<4x128xf32>
    %c64_i32_37 = arith.constant 64 : i32
    %99 = tpu.dynamic_rotate %98 by %c64_i32_37 dim 1 : vector<4x128xf32>, i32 -> vector<4x128xf32>
    %100 = math.tanh %98 : vector<4x128xf32>
    %c64_i32_38 = arith.constant 64 : i32
    %101 = tpu.dynamic_rotate %100 by %c64_i32_38 dim 1 : vector<4x128xf32>, i32 -> vector<4x128xf32>
    %102 = arith.mulf %94, %101 : vector<4x128xf32>
    %103 = vector.extract_strided_slice %6 {offsets = [8, 0], sizes = [4, 256], strides = [1, 1]} : vector<32x256xf32> to vector<4x256xf32>
    %104 = arith.truncf %83 : vector<4x128xf32> to vector<4x128xbf16>
    %cst_39 = arith.constant dense<0.000000e+00> : vector<4x256xf32>
    %105 = tpu.matmul %104, %11, %cst_39 {dimension_numbers = #tpu.dot_dimension_numbers<[1], [0], [0], [1], [0, 0, 1, 1], [], []>} : vector<4x128xbf16>, vector<128x256xbf16>, vector<4x256xf32> -> vector<4x256xf32>
    %106 = arith.addf %103, %105 : vector<4x256xf32>
    %107 = arith.mulf %106, %22 : vector<4x256xf32>
    %108 = math.tanh %107 : vector<4x256xf32>
    %109 = arith.mulf %108, %22 : vector<4x256xf32>
    %110 = arith.addf %109, %25 : vector<4x256xf32>
    %111 = vector.extract_strided_slice %110 {offsets = [0, 0], sizes = [4, 128], strides = [1, 1]} : vector<4x256xf32> to vector<4x128xf32>
    %112 = vector.extract_strided_slice %110 {offsets = [0, 128], sizes = [4, 128], strides = [1, 1]} : vector<4x256xf32> to vector<4x128xf32>
    %113 = arith.mulf %111, %112 : vector<4x128xf32>
    %114 = arith.mulf %111, %80 : vector<4x128xf32>
    %c64_i32_40 = arith.constant 64 : i32
    %115 = tpu.dynamic_rotate %114 by %c64_i32_40 dim 1 : vector<4x128xf32>, i32 -> vector<4x128xf32>
    %116 = arith.addf %113, %115 : vector<4x128xf32>
    %c64_i32_41 = arith.constant 64 : i32
    %117 = tpu.dynamic_rotate %116 by %c64_i32_41 dim 1 : vector<4x128xf32>, i32 -> vector<4x128xf32>
    %118 = math.tanh %116 : vector<4x128xf32>
    %c64_i32_42 = arith.constant 64 : i32
    %119 = tpu.dynamic_rotate %112 by %c64_i32_42 dim 1 : vector<4x128xf32>, i32 -> vector<4x128xf32>
    %120 = arith.mulf %119, %118 : vector<4x128xf32>
    %121 = arith.select %28, %120, %102 : vector<4x128xi1>, vector<4x128xf32>
    %122 = arith.truncf %121 : vector<4x128xf32> to vector<4x128xbf16>
    %cst_43 = arith.constant dense<0.000000e+00> : vector<4x256xf32>
    %123 = tpu.matmul %122, %12, %cst_43 {dimension_numbers = #tpu.dot_dimension_numbers<[1], [0], [0], [1], [0, 0, 1, 1], [], []>} : vector<4x128xbf16>, vector<128x256xbf16>, vector<4x256xf32> -> vector<4x256xf32>
    %124 = vector.broadcast %13 : vector<1x256xf32> to vector<4x256xf32>
    %125 = arith.addf %123, %124 : vector<4x256xf32>
    %126 = arith.mulf %125, %22 : vector<4x256xf32>
    %127 = math.tanh %126 : vector<4x256xf32>
    %128 = arith.mulf %127, %22 : vector<4x256xf32>
    %129 = arith.addf %128, %25 : vector<4x256xf32>
    %130 = vector.extract_strided_slice %129 {offsets = [0, 0], sizes = [4, 128], strides = [1, 1]} : vector<4x256xf32> to vector<4x128xf32>
    %131 = vector.extract_strided_slice %129 {offsets = [0, 128], sizes = [4, 128], strides = [1, 1]} : vector<4x256xf32> to vector<4x128xf32>
    %132 = arith.mulf %130, %131 : vector<4x128xf32>
    %133 = arith.mulf %130, %99 : vector<4x128xf32>
    %c64_i32_44 = arith.constant 64 : i32
    %134 = tpu.dynamic_rotate %133 by %c64_i32_44 dim 1 : vector<4x128xf32>, i32 -> vector<4x128xf32>
    %135 = arith.addf %132, %134 : vector<4x128xf32>
    %c64_i32_45 = arith.constant 64 : i32
    %136 = tpu.dynamic_rotate %135 by %c64_i32_45 dim 1 : vector<4x128xf32>, i32 -> vector<4x128xf32>
    %137 = math.tanh %135 : vector<4x128xf32>
    %c64_i32_46 = arith.constant 64 : i32
    %138 = tpu.dynamic_rotate %137 by %c64_i32_46 dim 1 : vector<4x128xf32>, i32 -> vector<4x128xf32>
    %139 = arith.mulf %131, %138 : vector<4x128xf32>
    %140 = vector.extract_strided_slice %6 {offsets = [12, 0], sizes = [4, 256], strides = [1, 1]} : vector<32x256xf32> to vector<4x256xf32>
    %141 = arith.truncf %120 : vector<4x128xf32> to vector<4x128xbf16>
    %cst_47 = arith.constant dense<0.000000e+00> : vector<4x256xf32>
    %142 = tpu.matmul %141, %11, %cst_47 {dimension_numbers = #tpu.dot_dimension_numbers<[1], [0], [0], [1], [0, 0, 1, 1], [], []>} : vector<4x128xbf16>, vector<128x256xbf16>, vector<4x256xf32> -> vector<4x256xf32>
    %143 = arith.addf %140, %142 : vector<4x256xf32>
    %144 = arith.mulf %143, %22 : vector<4x256xf32>
    %145 = math.tanh %144 : vector<4x256xf32>
    %146 = arith.mulf %145, %22 : vector<4x256xf32>
    %147 = arith.addf %146, %25 : vector<4x256xf32>
    %148 = vector.extract_strided_slice %147 {offsets = [0, 0], sizes = [4, 128], strides = [1, 1]} : vector<4x256xf32> to vector<4x128xf32>
    %149 = vector.extract_strided_slice %147 {offsets = [0, 128], sizes = [4, 128], strides = [1, 1]} : vector<4x256xf32> to vector<4x128xf32>
    %150 = arith.mulf %148, %149 : vector<4x128xf32>
    %151 = arith.mulf %148, %117 : vector<4x128xf32>
    %c64_i32_48 = arith.constant 64 : i32
    %152 = tpu.dynamic_rotate %151 by %c64_i32_48 dim 1 : vector<4x128xf32>, i32 -> vector<4x128xf32>
    %153 = arith.addf %150, %152 : vector<4x128xf32>
    %c64_i32_49 = arith.constant 64 : i32
    %154 = tpu.dynamic_rotate %153 by %c64_i32_49 dim 1 : vector<4x128xf32>, i32 -> vector<4x128xf32>
    %155 = math.tanh %153 : vector<4x128xf32>
    %c64_i32_50 = arith.constant 64 : i32
    %156 = tpu.dynamic_rotate %149 by %c64_i32_50 dim 1 : vector<4x128xf32>, i32 -> vector<4x128xf32>
    %157 = arith.mulf %156, %155 : vector<4x128xf32>
    %158 = arith.select %28, %157, %139 : vector<4x128xi1>, vector<4x128xf32>
    %159 = arith.truncf %158 : vector<4x128xf32> to vector<4x128xbf16>
    %cst_51 = arith.constant dense<0.000000e+00> : vector<4x256xf32>
    %160 = tpu.matmul %159, %12, %cst_51 {dimension_numbers = #tpu.dot_dimension_numbers<[1], [0], [0], [1], [0, 0, 1, 1], [], []>} : vector<4x128xbf16>, vector<128x256xbf16>, vector<4x256xf32> -> vector<4x256xf32>
    %161 = vector.broadcast %13 : vector<1x256xf32> to vector<4x256xf32>
    %162 = arith.addf %160, %161 : vector<4x256xf32>
    %163 = arith.mulf %162, %22 : vector<4x256xf32>
    %164 = math.tanh %163 : vector<4x256xf32>
    %165 = arith.mulf %164, %22 : vector<4x256xf32>
    %166 = arith.addf %165, %25 : vector<4x256xf32>
    %167 = vector.extract_strided_slice %166 {offsets = [0, 0], sizes = [4, 128], strides = [1, 1]} : vector<4x256xf32> to vector<4x128xf32>
    %168 = vector.extract_strided_slice %166 {offsets = [0, 128], sizes = [4, 128], strides = [1, 1]} : vector<4x256xf32> to vector<4x128xf32>
    %169 = arith.mulf %167, %168 : vector<4x128xf32>
    %170 = arith.mulf %167, %136 : vector<4x128xf32>
    %c64_i32_52 = arith.constant 64 : i32
    %171 = tpu.dynamic_rotate %170 by %c64_i32_52 dim 1 : vector<4x128xf32>, i32 -> vector<4x128xf32>
    %172 = arith.addf %169, %171 : vector<4x128xf32>
    %c64_i32_53 = arith.constant 64 : i32
    %173 = tpu.dynamic_rotate %172 by %c64_i32_53 dim 1 : vector<4x128xf32>, i32 -> vector<4x128xf32>
    %174 = math.tanh %172 : vector<4x128xf32>
    %c64_i32_54 = arith.constant 64 : i32
    %175 = tpu.dynamic_rotate %174 by %c64_i32_54 dim 1 : vector<4x128xf32>, i32 -> vector<4x128xf32>
    %176 = arith.mulf %168, %175 : vector<4x128xf32>
    %177 = vector.extract_strided_slice %6 {offsets = [16, 0], sizes = [4, 256], strides = [1, 1]} : vector<32x256xf32> to vector<4x256xf32>
    %178 = arith.truncf %157 : vector<4x128xf32> to vector<4x128xbf16>
    %cst_55 = arith.constant dense<0.000000e+00> : vector<4x256xf32>
    %179 = tpu.matmul %178, %11, %cst_55 {dimension_numbers = #tpu.dot_dimension_numbers<[1], [0], [0], [1], [0, 0, 1, 1], [], []>} : vector<4x128xbf16>, vector<128x256xbf16>, vector<4x256xf32> -> vector<4x256xf32>
    %180 = arith.addf %177, %179 : vector<4x256xf32>
    %181 = arith.mulf %180, %22 : vector<4x256xf32>
    %182 = math.tanh %181 : vector<4x256xf32>
    %183 = arith.mulf %182, %22 : vector<4x256xf32>
    %184 = arith.addf %183, %25 : vector<4x256xf32>
    %185 = vector.extract_strided_slice %184 {offsets = [0, 0], sizes = [4, 128], strides = [1, 1]} : vector<4x256xf32> to vector<4x128xf32>
    %186 = vector.extract_strided_slice %184 {offsets = [0, 128], sizes = [4, 128], strides = [1, 1]} : vector<4x256xf32> to vector<4x128xf32>
    %187 = arith.mulf %185, %186 : vector<4x128xf32>
    %188 = arith.mulf %185, %154 : vector<4x128xf32>
    %c64_i32_56 = arith.constant 64 : i32
    %189 = tpu.dynamic_rotate %188 by %c64_i32_56 dim 1 : vector<4x128xf32>, i32 -> vector<4x128xf32>
    %190 = arith.addf %187, %189 : vector<4x128xf32>
    %c64_i32_57 = arith.constant 64 : i32
    %191 = tpu.dynamic_rotate %190 by %c64_i32_57 dim 1 : vector<4x128xf32>, i32 -> vector<4x128xf32>
    %192 = math.tanh %190 : vector<4x128xf32>
    %c64_i32_58 = arith.constant 64 : i32
    %193 = tpu.dynamic_rotate %186 by %c64_i32_58 dim 1 : vector<4x128xf32>, i32 -> vector<4x128xf32>
    %194 = arith.mulf %193, %192 : vector<4x128xf32>
    %195 = arith.select %28, %194, %176 : vector<4x128xi1>, vector<4x128xf32>
    %196 = arith.truncf %195 : vector<4x128xf32> to vector<4x128xbf16>
    %cst_59 = arith.constant dense<0.000000e+00> : vector<4x256xf32>
    %197 = tpu.matmul %196, %12, %cst_59 {dimension_numbers = #tpu.dot_dimension_numbers<[1], [0], [0], [1], [0, 0, 1, 1], [], []>} : vector<4x128xbf16>, vector<128x256xbf16>, vector<4x256xf32> -> vector<4x256xf32>
    %198 = vector.broadcast %13 : vector<1x256xf32> to vector<4x256xf32>
    %199 = arith.addf %197, %198 : vector<4x256xf32>
    %200 = arith.mulf %199, %22 : vector<4x256xf32>
    %201 = math.tanh %200 : vector<4x256xf32>
    %202 = arith.mulf %201, %22 : vector<4x256xf32>
    %203 = arith.addf %202, %25 : vector<4x256xf32>
    %204 = vector.extract_strided_slice %203 {offsets = [0, 0], sizes = [4, 128], strides = [1, 1]} : vector<4x256xf32> to vector<4x128xf32>
    %205 = vector.extract_strided_slice %203 {offsets = [0, 128], sizes = [4, 128], strides = [1, 1]} : vector<4x256xf32> to vector<4x128xf32>
    %206 = arith.mulf %204, %205 : vector<4x128xf32>
    %207 = arith.mulf %204, %173 : vector<4x128xf32>
    %c64_i32_60 = arith.constant 64 : i32
    %208 = tpu.dynamic_rotate %207 by %c64_i32_60 dim 1 : vector<4x128xf32>, i32 -> vector<4x128xf32>
    %209 = arith.addf %206, %208 : vector<4x128xf32>
    %c64_i32_61 = arith.constant 64 : i32
    %210 = tpu.dynamic_rotate %209 by %c64_i32_61 dim 1 : vector<4x128xf32>, i32 -> vector<4x128xf32>
    %211 = math.tanh %209 : vector<4x128xf32>
    %c64_i32_62 = arith.constant 64 : i32
    %212 = tpu.dynamic_rotate %211 by %c64_i32_62 dim 1 : vector<4x128xf32>, i32 -> vector<4x128xf32>
    %213 = arith.mulf %205, %212 : vector<4x128xf32>
    %214 = vector.extract_strided_slice %6 {offsets = [20, 0], sizes = [4, 256], strides = [1, 1]} : vector<32x256xf32> to vector<4x256xf32>
    %215 = arith.truncf %194 : vector<4x128xf32> to vector<4x128xbf16>
    %cst_63 = arith.constant dense<0.000000e+00> : vector<4x256xf32>
    %216 = tpu.matmul %215, %11, %cst_63 {dimension_numbers = #tpu.dot_dimension_numbers<[1], [0], [0], [1], [0, 0, 1, 1], [], []>} : vector<4x128xbf16>, vector<128x256xbf16>, vector<4x256xf32> -> vector<4x256xf32>
    %217 = arith.addf %214, %216 : vector<4x256xf32>
    %218 = arith.mulf %217, %22 : vector<4x256xf32>
    %219 = math.tanh %218 : vector<4x256xf32>
    %220 = arith.mulf %219, %22 : vector<4x256xf32>
    %221 = arith.addf %220, %25 : vector<4x256xf32>
    %222 = vector.extract_strided_slice %221 {offsets = [0, 0], sizes = [4, 128], strides = [1, 1]} : vector<4x256xf32> to vector<4x128xf32>
    %223 = vector.extract_strided_slice %221 {offsets = [0, 128], sizes = [4, 128], strides = [1, 1]} : vector<4x256xf32> to vector<4x128xf32>
    %224 = arith.mulf %222, %223 : vector<4x128xf32>
    %225 = arith.mulf %222, %191 : vector<4x128xf32>
    %c64_i32_64 = arith.constant 64 : i32
    %226 = tpu.dynamic_rotate %225 by %c64_i32_64 dim 1 : vector<4x128xf32>, i32 -> vector<4x128xf32>
    %227 = arith.addf %224, %226 : vector<4x128xf32>
    %c64_i32_65 = arith.constant 64 : i32
    %228 = tpu.dynamic_rotate %227 by %c64_i32_65 dim 1 : vector<4x128xf32>, i32 -> vector<4x128xf32>
    %229 = math.tanh %227 : vector<4x128xf32>
    %c64_i32_66 = arith.constant 64 : i32
    %230 = tpu.dynamic_rotate %223 by %c64_i32_66 dim 1 : vector<4x128xf32>, i32 -> vector<4x128xf32>
    %231 = arith.mulf %230, %229 : vector<4x128xf32>
    %232 = arith.select %28, %231, %213 : vector<4x128xi1>, vector<4x128xf32>
    %233 = arith.truncf %232 : vector<4x128xf32> to vector<4x128xbf16>
    %cst_67 = arith.constant dense<0.000000e+00> : vector<4x256xf32>
    %234 = tpu.matmul %233, %12, %cst_67 {dimension_numbers = #tpu.dot_dimension_numbers<[1], [0], [0], [1], [0, 0, 1, 1], [], []>} : vector<4x128xbf16>, vector<128x256xbf16>, vector<4x256xf32> -> vector<4x256xf32>
    %235 = vector.broadcast %13 : vector<1x256xf32> to vector<4x256xf32>
    %236 = arith.addf %234, %235 : vector<4x256xf32>
    %237 = arith.mulf %236, %22 : vector<4x256xf32>
    %238 = math.tanh %237 : vector<4x256xf32>
    %239 = arith.mulf %238, %22 : vector<4x256xf32>
    %240 = arith.addf %239, %25 : vector<4x256xf32>
    %241 = vector.extract_strided_slice %240 {offsets = [0, 0], sizes = [4, 128], strides = [1, 1]} : vector<4x256xf32> to vector<4x128xf32>
    %242 = vector.extract_strided_slice %240 {offsets = [0, 128], sizes = [4, 128], strides = [1, 1]} : vector<4x256xf32> to vector<4x128xf32>
    %243 = arith.mulf %241, %242 : vector<4x128xf32>
    %244 = arith.mulf %241, %210 : vector<4x128xf32>
    %c64_i32_68 = arith.constant 64 : i32
    %245 = tpu.dynamic_rotate %244 by %c64_i32_68 dim 1 : vector<4x128xf32>, i32 -> vector<4x128xf32>
    %246 = arith.addf %243, %245 : vector<4x128xf32>
    %c64_i32_69 = arith.constant 64 : i32
    %247 = tpu.dynamic_rotate %246 by %c64_i32_69 dim 1 : vector<4x128xf32>, i32 -> vector<4x128xf32>
    %248 = math.tanh %246 : vector<4x128xf32>
    %c64_i32_70 = arith.constant 64 : i32
    %249 = tpu.dynamic_rotate %248 by %c64_i32_70 dim 1 : vector<4x128xf32>, i32 -> vector<4x128xf32>
    %250 = arith.mulf %242, %249 : vector<4x128xf32>
    %251 = vector.extract_strided_slice %6 {offsets = [24, 0], sizes = [4, 256], strides = [1, 1]} : vector<32x256xf32> to vector<4x256xf32>
    %252 = arith.truncf %231 : vector<4x128xf32> to vector<4x128xbf16>
    %cst_71 = arith.constant dense<0.000000e+00> : vector<4x256xf32>
    %253 = tpu.matmul %252, %11, %cst_71 {dimension_numbers = #tpu.dot_dimension_numbers<[1], [0], [0], [1], [0, 0, 1, 1], [], []>} : vector<4x128xbf16>, vector<128x256xbf16>, vector<4x256xf32> -> vector<4x256xf32>
    %254 = arith.addf %251, %253 : vector<4x256xf32>
    %255 = arith.mulf %254, %22 : vector<4x256xf32>
    %256 = math.tanh %255 : vector<4x256xf32>
    %257 = arith.mulf %256, %22 : vector<4x256xf32>
    %258 = arith.addf %257, %25 : vector<4x256xf32>
    %259 = vector.extract_strided_slice %258 {offsets = [0, 0], sizes = [4, 128], strides = [1, 1]} : vector<4x256xf32> to vector<4x128xf32>
    %260 = vector.extract_strided_slice %258 {offsets = [0, 128], sizes = [4, 128], strides = [1, 1]} : vector<4x256xf32> to vector<4x128xf32>
    %261 = arith.mulf %259, %260 : vector<4x128xf32>
    %262 = arith.mulf %259, %228 : vector<4x128xf32>
    %c64_i32_72 = arith.constant 64 : i32
    %263 = tpu.dynamic_rotate %262 by %c64_i32_72 dim 1 : vector<4x128xf32>, i32 -> vector<4x128xf32>
    %264 = arith.addf %261, %263 : vector<4x128xf32>
    %c64_i32_73 = arith.constant 64 : i32
    %265 = tpu.dynamic_rotate %264 by %c64_i32_73 dim 1 : vector<4x128xf32>, i32 -> vector<4x128xf32>
    %266 = math.tanh %264 : vector<4x128xf32>
    %c64_i32_74 = arith.constant 64 : i32
    %267 = tpu.dynamic_rotate %260 by %c64_i32_74 dim 1 : vector<4x128xf32>, i32 -> vector<4x128xf32>
    %268 = arith.mulf %267, %266 : vector<4x128xf32>
    %269 = arith.select %28, %268, %250 : vector<4x128xi1>, vector<4x128xf32>
    %270 = arith.truncf %269 : vector<4x128xf32> to vector<4x128xbf16>
    %cst_75 = arith.constant dense<0.000000e+00> : vector<4x256xf32>
    %271 = tpu.matmul %270, %12, %cst_75 {dimension_numbers = #tpu.dot_dimension_numbers<[1], [0], [0], [1], [0, 0, 1, 1], [], []>} : vector<4x128xbf16>, vector<128x256xbf16>, vector<4x256xf32> -> vector<4x256xf32>
    %272 = vector.broadcast %13 : vector<1x256xf32> to vector<4x256xf32>
    %273 = arith.addf %271, %272 : vector<4x256xf32>
    %274 = arith.mulf %273, %22 : vector<4x256xf32>
    %275 = math.tanh %274 : vector<4x256xf32>
    %276 = arith.mulf %275, %22 : vector<4x256xf32>
    %277 = arith.addf %276, %25 : vector<4x256xf32>
    %278 = vector.extract_strided_slice %277 {offsets = [0, 0], sizes = [4, 128], strides = [1, 1]} : vector<4x256xf32> to vector<4x128xf32>
    %279 = vector.extract_strided_slice %277 {offsets = [0, 128], sizes = [4, 128], strides = [1, 1]} : vector<4x256xf32> to vector<4x128xf32>
    %280 = arith.mulf %278, %279 : vector<4x128xf32>
    %281 = arith.mulf %278, %247 : vector<4x128xf32>
    %c64_i32_76 = arith.constant 64 : i32
    %282 = tpu.dynamic_rotate %281 by %c64_i32_76 dim 1 : vector<4x128xf32>, i32 -> vector<4x128xf32>
    %283 = arith.addf %280, %282 : vector<4x128xf32>
    %c64_i32_77 = arith.constant 64 : i32
    %284 = tpu.dynamic_rotate %283 by %c64_i32_77 dim 1 : vector<4x128xf32>, i32 -> vector<4x128xf32>
    %285 = math.tanh %283 : vector<4x128xf32>
    %c64_i32_78 = arith.constant 64 : i32
    %286 = tpu.dynamic_rotate %285 by %c64_i32_78 dim 1 : vector<4x128xf32>, i32 -> vector<4x128xf32>
    %287 = arith.mulf %279, %286 : vector<4x128xf32>
    %288 = vector.extract_strided_slice %6 {offsets = [28, 0], sizes = [4, 256], strides = [1, 1]} : vector<32x256xf32> to vector<4x256xf32>
    %289 = arith.truncf %268 : vector<4x128xf32> to vector<4x128xbf16>
    %cst_79 = arith.constant dense<0.000000e+00> : vector<4x256xf32>
    %290 = tpu.matmul %289, %11, %cst_79 {dimension_numbers = #tpu.dot_dimension_numbers<[1], [0], [0], [1], [0, 0, 1, 1], [], []>} : vector<4x128xbf16>, vector<128x256xbf16>, vector<4x256xf32> -> vector<4x256xf32>
    %291 = arith.addf %288, %290 : vector<4x256xf32>
    %292 = arith.mulf %291, %22 : vector<4x256xf32>
    %293 = math.tanh %292 : vector<4x256xf32>
    %294 = arith.mulf %293, %22 : vector<4x256xf32>
    %295 = arith.addf %294, %25 : vector<4x256xf32>
    %296 = vector.extract_strided_slice %295 {offsets = [0, 0], sizes = [4, 128], strides = [1, 1]} : vector<4x256xf32> to vector<4x128xf32>
    %297 = vector.extract_strided_slice %295 {offsets = [0, 128], sizes = [4, 128], strides = [1, 1]} : vector<4x256xf32> to vector<4x128xf32>
    %298 = arith.mulf %296, %297 : vector<4x128xf32>
    %299 = arith.mulf %296, %265 : vector<4x128xf32>
    %c64_i32_80 = arith.constant 64 : i32
    %300 = tpu.dynamic_rotate %299 by %c64_i32_80 dim 1 : vector<4x128xf32>, i32 -> vector<4x128xf32>
    %301 = arith.addf %298, %300 : vector<4x128xf32>
    %302 = math.tanh %301 : vector<4x128xf32>
    %c64_i32_81 = arith.constant 64 : i32
    %303 = tpu.dynamic_rotate %297 by %c64_i32_81 dim 1 : vector<4x128xf32>, i32 -> vector<4x128xf32>
    %304 = arith.mulf %303, %302 : vector<4x128xf32>
    %305 = arith.select %28, %304, %287 : vector<4x128xi1>, vector<4x128xf32>
    %306 = arith.truncf %305 : vector<4x128xf32> to vector<4x128xbf16>
    %cst_82 = arith.constant dense<0.000000e+00> : vector<4x256xf32>
    %307 = tpu.matmul %306, %12, %cst_82 {dimension_numbers = #tpu.dot_dimension_numbers<[1], [0], [0], [1], [0, 0, 1, 1], [], []>} : vector<4x128xbf16>, vector<128x256xbf16>, vector<4x256xf32> -> vector<4x256xf32>
    %308 = vector.broadcast %13 : vector<1x256xf32> to vector<4x256xf32>
    %309 = arith.addf %307, %308 : vector<4x256xf32>
    %310 = arith.mulf %309, %22 : vector<4x256xf32>
    %311 = math.tanh %310 : vector<4x256xf32>
    %312 = arith.mulf %311, %22 : vector<4x256xf32>
    %313 = arith.addf %312, %25 : vector<4x256xf32>
    %314 = vector.extract_strided_slice %313 {offsets = [0, 0], sizes = [4, 128], strides = [1, 1]} : vector<4x256xf32> to vector<4x128xf32>
    %315 = vector.extract_strided_slice %313 {offsets = [0, 128], sizes = [4, 128], strides = [1, 1]} : vector<4x256xf32> to vector<4x128xf32>
    %316 = arith.mulf %314, %315 : vector<4x128xf32>
    %317 = arith.mulf %314, %284 : vector<4x128xf32>
    %c64_i32_83 = arith.constant 64 : i32
    %318 = tpu.dynamic_rotate %317 by %c64_i32_83 dim 1 : vector<4x128xf32>, i32 -> vector<4x128xf32>
    %319 = arith.addf %316, %318 : vector<4x128xf32>
    %320 = math.tanh %319 : vector<4x128xf32>
    %c64_i32_84 = arith.constant 64 : i32
    %321 = tpu.dynamic_rotate %320 by %c64_i32_84 dim 1 : vector<4x128xf32>, i32 -> vector<4x128xf32>
    %322 = arith.mulf %315, %321 : vector<4x128xf32>
    %c0_85 = arith.constant 0 : index
    %c0_86 = arith.constant 0 : index
    %323 = vector.load %arg10[%c0_85, %c0_86] : memref<128x16xf32, #tpu.memory_space<vmem>>, vector<128x16xf32>
    %cst_87 = arith.constant dense<0.000000e+00> : vector<4x16xf32>
    %324 = tpu.matmul %322, %323, %cst_87 {dimension_numbers = #tpu.dot_dimension_numbers<[1], [0], [0], [1], [0, 0, 1, 1], [], []>} : vector<4x128xf32>, vector<128x16xf32>, vector<4x16xf32> -> vector<4x16xf32>
    %c0_88 = arith.constant 0 : index
    %c0_89 = arith.constant 0 : index
    %325 = vector.load %arg11[%c0_88, %c0_89] : memref<1x16xf32, #tpu.memory_space<vmem>>, vector<1x16xf32>
    %326 = vector.broadcast %325 : vector<1x16xf32> to vector<4x16xf32>
    %327 = arith.addf %324, %326 : vector<4x16xf32>
    %328 = tpu.iota {dimensions = array<i32: 1>} : vector<4x16xi32>
    %c7_i32 = arith.constant 7 : i32
    %329 = vector.broadcast %c7_i32 : i32 to vector<4x16xi32>
    %330 = arith.cmpi slt, %328, %329 : vector<4x16xi32>
    %c8_i32 = arith.constant 8 : i32
    %331 = vector.broadcast %c8_i32 : i32 to vector<4x16xi32>
    %332 = arith.cmpi sge, %328, %331 : vector<4x16xi32>
    %c10_i32 = arith.constant 10 : i32
    %333 = vector.broadcast %c10_i32 : i32 to vector<4x16xi32>
    %334 = arith.cmpi slt, %328, %333 : vector<4x16xi32>
    %335 = arith.andi %332, %334 : vector<4x16xi1>
    %336 = arith.extui %330 : vector<4x16xi1> to vector<4x16xi32>
    %337 = arith.sitofp %336 : vector<4x16xi32> to vector<4x16xf32>
    %338 = arith.extui %335 : vector<4x16xi1> to vector<4x16xi32>
    %339 = arith.sitofp %338 : vector<4x16xi32> to vector<4x16xf32>
    %340 = arith.mulf %327, %337 : vector<4x16xf32>
    %341 = vector.shape_cast %340 : vector<4x16xf32> to vector<1x4x16xf32>
    %cst_90 = arith.constant dense<0.000000e+00> : vector<1xf32>
    %342 = vector.multi_reduction <add>, %341, %cst_90 [1, 2] : vector<1x4x16xf32> to vector<1xf32>
    %343 = vector.shape_cast %342 : vector<1xf32> to vector<1x1x1xf32>
    %344 = vector.extract %343[0, 0, 0] : f32 from vector<1x1x1xf32>
    %cst_91 = arith.constant 2.800000e+01 : f32
    %345 = arith.divf %344, %cst_91 : f32
    %346 = arith.mulf %327, %339 : vector<4x16xf32>
    %347 = vector.shape_cast %346 : vector<4x16xf32> to vector<1x4x16xf32>
    %cst_92 = arith.constant dense<0.000000e+00> : vector<1xf32>
    %348 = vector.multi_reduction <add>, %347, %cst_92 [1, 2] : vector<1x4x16xf32> to vector<1xf32>
    %349 = vector.shape_cast %348 : vector<1xf32> to vector<1x1x1xf32>
    %350 = vector.extract %349[0, 0, 0] : f32 from vector<1x1x1xf32>
    %cst_93 = arith.constant 8.000000e+00 : f32
    %351 = arith.divf %350, %cst_93 : f32
    %352 = vector.broadcast %345 : f32 to vector<4x16xf32>
    %353 = arith.subf %327, %352 : vector<4x16xf32>
    %354 = arith.mulf %353, %353 : vector<4x16xf32>
    %355 = arith.mulf %354, %337 : vector<4x16xf32>
    %356 = vector.shape_cast %355 : vector<4x16xf32> to vector<1x4x16xf32>
    %cst_94 = arith.constant dense<0.000000e+00> : vector<1xf32>
    %357 = vector.multi_reduction <add>, %356, %cst_94 [1, 2] : vector<1x4x16xf32> to vector<1xf32>
    %358 = vector.shape_cast %357 : vector<1xf32> to vector<1x1x1xf32>
    %359 = vector.extract %358[0, 0, 0] : f32 from vector<1x1x1xf32>
    %cst_95 = arith.constant 2.800000e+01 : f32
    %360 = arith.divf %359, %cst_95 : f32
    %361 = vector.broadcast %351 : f32 to vector<4x16xf32>
    %362 = arith.subf %327, %361 : vector<4x16xf32>
    %363 = arith.mulf %362, %362 : vector<4x16xf32>
    %364 = arith.mulf %363, %339 : vector<4x16xf32>
    %365 = vector.shape_cast %364 : vector<4x16xf32> to vector<1x4x16xf32>
    %cst_96 = arith.constant dense<0.000000e+00> : vector<1xf32>
    %366 = vector.multi_reduction <add>, %365, %cst_96 [1, 2] : vector<1x4x16xf32> to vector<1xf32>
    %367 = vector.shape_cast %366 : vector<1xf32> to vector<1x1x1xf32>
    %368 = vector.extract %367[0, 0, 0] : f32 from vector<1x1x1xf32>
    %cst_97 = arith.constant 8.000000e+00 : f32
    %369 = arith.divf %368, %cst_97 : f32
    %cst_98 = arith.constant 9.99999974E-6 : f32
    %370 = arith.addf %360, %cst_98 : f32
    %371 = math.rsqrt %370 : f32
    %cst_99 = arith.constant 9.99999974E-6 : f32
    %372 = arith.addf %369, %cst_99 : f32
    %373 = math.rsqrt %372 : f32
    %374 = vector.broadcast %345 : f32 to vector<4x16xf32>
    %375 = vector.broadcast %351 : f32 to vector<4x16xf32>
    %376 = arith.select %330, %374, %375 : vector<4x16xi1>, vector<4x16xf32>
    %377 = vector.broadcast %371 : f32 to vector<4x16xf32>
    %378 = vector.broadcast %373 : f32 to vector<4x16xf32>
    %379 = arith.select %330, %377, %378 : vector<4x16xi1>, vector<4x16xf32>
    %380 = arith.subf %327, %376 : vector<4x16xf32>
    %381 = arith.mulf %380, %379 : vector<4x16xf32>
    %382 = arith.addf %337, %339 : vector<4x16xf32>
    %383 = arith.mulf %381, %382 : vector<4x16xf32>
    %c0_100 = arith.constant 0 : index
    %c0_101 = arith.constant 0 : index
    %384 = vector.load %arg12[%c0_100, %c0_101] : memref<4x16xf32, #tpu.memory_space<vmem>>, vector<4x16xf32>
    tpu.vector_store %arg12[%c0_100, %c0_101], %383 {strides = array<i32>} : memref<4x16xf32, #tpu.memory_space<vmem>>, vector<4x16xf32>,
    return
  }
}

</mosaic_0001>

<llo_original>
// kernel: tpu_custom_call.1
$region0: #{tpu_custom_call.1}
  #allocation0 [shape = 'u32[]', space=smem, size = 0x4, offset = 0x4, fixed_abs, tag = 'smem constant byte address 0x4 - core index']
  #allocation1 [shape = 'u32[144,128]{1,0:T(1,128)}', space=vmem, size = 0x12000, scoped, tag = 'internal scratch']
  %s0 = inlined_call_operand.vmem [shape: f32[32,21], index: 0, kind: input, shape index: {}]
  %s1 = inlined_call_operand.vmem [shape: f32[4,128], index: 1, kind: input, shape index: {}]
  %s2 = inlined_call_operand.vmem [shape: f32[4,128], index: 2, kind: input, shape index: {}]
  %s3 = inlined_call_operand.vmem [shape: f32[4,128], index: 3, kind: input, shape index: {}]
  %s4 = inlined_call_operand.vmem [shape: f32[4,128], index: 4, kind: input, shape index: {}]
  %s5 = inlined_call_operand.vmem [shape: bf16[21,256], index: 5, kind: input, shape index: {}]
  %s6 = inlined_call_operand.vmem [shape: f32[1,256], index: 6, kind: input, shape index: {}]
  %s7 = inlined_call_operand.vmem [shape: bf16[128,256], index: 7, kind: input, shape index: {}]
  %s8 = inlined_call_operand.hbm [shape: bf16[128,256], index: 8, kind: input, shape index: {}]
  %s9 = inlined_call_operand.vmem [shape: f32[1,256], index: 9, kind: input, shape index: {}]
  %s10 = inlined_call_operand.vmem [shape: f32[128,16], index: 10, kind: input, shape index: {}]
  %s11 = inlined_call_operand.vmem [shape: f32[1,16], index: 11, kind: input, shape index: {}]
  %s12 = inlined_call_operand.hbm [shape: f32[4,16], index: 12, kind: output, shape index: {}]
  %s13 = sld [smem:[#allocation0]]
  $region62: #{tpu_custom_call.1} parent=0
    _
  %s15 = ssub.s32 1, %s13
  %s16 = scalar_select 0, %s15, %s13
  $region1: #{tpu_custom_call.1} parent=0
    #allocation2 [shape = 'u8[65536]{0}', space=vmem, size = 0x10000, scoped, tag = 'input window, operand 8, single buffered']
    #allocation3 [shape = 's32[1]{0}', space=sflag, size = 0x4, scoped, tag = 'scoped memory for tpu_custom_call.1']
    #allocation4 [shape = 's32[1]{0}', space=sflag, size = 0x4, scoped, tag = 'scoped memory for tpu_custom_call.1']
    #allocation5 [shape = 'u8[2048]{0}', space=vmem, size = 0x800, scoped, tag = 'output window, operand 0, single buffered']
    %17 = vsyncpa [#allocation3], 0
    %18 = vsyncpa [#allocation4], 0
    // Predicated region
    $region2: #{tpu_custom_call.1} parent=1 // pred_check
      _
    $region3: #{tpu_custom_call.1} parent=1 // pred_check_branch
      %20 = sbr.rel (0) target = $region5
    $region4: #{tpu_custom_call.1} parent=1 // pred_region
      _
    $region5: #{tpu_custom_call.1} parent=1 // pred_fallthru
      _
    // Predicated region
    $region6: #{tpu_custom_call.1} parent=1 // pred_check
      _
    $region7: #{tpu_custom_call.1} parent=1 // pred_check_branch
      %22 = sbr.rel (0) target = $region9
    $region8: #{tpu_custom_call.1} parent=1 // pred_region
      _
    $region9: #{tpu_custom_call.1} parent=1 // pred_fallthru
      _
    // Predicated region
    $region10: #{tpu_custom_call.1} parent=1 // pred_check
      _
    $region11: #{tpu_custom_call.1} parent=1 // pred_check_branch
      %24 = sbr.rel (0) target = $region13
    $region12: #{tpu_custom_call.1} parent=1 // pred_region
      _
    $region13: #{tpu_custom_call.1} parent=1 // pred_fallthru
      _
    // Predicated region
    $region14: #{tpu_custom_call.1} parent=1 // pred_check
      _
    $region15: #{tpu_custom_call.1} parent=1 // pred_check_branch
      %26 = sbr.rel (0) target = $region17
    $region16: #{tpu_custom_call.1} parent=1 // pred_region
      _
    $region17: #{tpu_custom_call.1} parent=1 // pred_fallthru
      _
    // Predicated region
    $region18: #{tpu_custom_call.1} parent=1 // pred_check
      _
    $region19: #{tpu_custom_call.1} parent=1 // pred_check_branch
      %28 = sbr.rel (0) target = $region21
    $region20: #{tpu_custom_call.1} parent=1 // pred_region
      _
    $region21: #{tpu_custom_call.1} parent=1 // pred_fallthru
      _
    // Predicated region
    $region22: #{tpu_custom_call.1} parent=1 // pred_check
      _
    $region23: #{tpu_custom_call.1} parent=1 // pred_check_branch
      %30 = sbr.rel (0) target = $region25
    $region24: #{tpu_custom_call.1} parent=1 // pred_region
      _
    $region25: #{tpu_custom_call.1} parent=1 // pred_fallthru
      _
    // Predicated region
    $region26: #{tpu_custom_call.1} parent=1 // pred_check
      _
    $region27: #{tpu_custom_call.1} parent=1 // pred_check_branch
      %32 = sbr.rel (0) target = $region29
    $region28: #{tpu_custom_call.1} parent=1 // pred_region
      _
    $region29: #{tpu_custom_call.1} parent=1 // pred_fallthru
      _
    // Predicated region
    $region30: #{tpu_custom_call.1} parent=1 // pred_check
      _
    $region31: #{tpu_custom_call.1} parent=1 // pred_check_branch
      %34 = sbr.rel (0) target = $region33
    $region32: #{tpu_custom_call.1} parent=1 // pred_region
      _
    $region33: #{tpu_custom_call.1} parent=1 // pred_fallthru
      _
    // Predicated region
    $region34: #{tpu_custom_call.1} parent=1 // pred_check
      _
    $region35: #{tpu_custom_call.1} parent=1 // pred_check_branch
      %36 = sbr.rel (0) target = $region37
    $region36: #{tpu_custom_call.1} parent=1 // pred_region
      %s38 = ssub.s32 2048, 2048
      %39 = vsyncadd [#allocation3], %s38
      %s40 = sshll.u32 [#allocation2], 4
      %s41 = int_to_ptr.vmem [resolvable:$true] %s40
      %46 = dma.hbm_to_vmem [thread:$0]  %s8, 2048, %s41, [#allocation3], 128, 128, 8
    $region37: #{tpu_custom_call.1} parent=1 // pred_fallthru
      _
    // Predicated region
    $region38: #{tpu_custom_call.1} parent=1 // pred_check
      _
    $region39: #{tpu_custom_call.1} parent=1 // pred_check_branch
      %48 = sbr.rel (0) target = $region41
    $region40: #{tpu_custom_call.1} parent=1 // pred_region
      _
    $region41: #{tpu_custom_call.1} parent=1 // pred_fallthru
      _
    // Predicated region
    $region42: #{tpu_custom_call.1} parent=1 // pred_check
      _
    $region43: #{tpu_custom_call.1} parent=1 // pred_check_branch
      %50 = sbr.rel (0) target = $region45
    $region44: #{tpu_custom_call.1} parent=1 // pred_region
      _
    $region45: #{tpu_custom_call.1} parent=1 // pred_fallthru
      _
    // Predicated region
    $region46: #{tpu_custom_call.1} parent=1 // pred_check
      _
    $region47: #{tpu_custom_call.1} parent=1 // pred_check_branch
      %52 = sbr.rel (0) target = $region49
    $region48: #{tpu_custom_call.1} parent=1 // pred_region
      _
    $region49: #{tpu_custom_call.1} parent=1 // pred_fallthru
      _
    // Predicated region
    $region50: #{tpu_custom_call.1} parent=1 // pred_check
      _
    $region51: #{tpu_custom_call.1} parent=1 // pred_check_branch
      %54 = sbr.rel (0) target = $region53
    $region52: #{tpu_custom_call.1} parent=1 // pred_region
      %55 = dma.done [#allocation3], 2048
    $region53: #{tpu_custom_call.1} parent=1 // pred_fallthru
      _
    %v57 = vld [vmem:[%s0] sm:$0xff]
    %v58 = vld [vmem:[%s0 + $0x8] sm:$0xff]
    %v59 = vld [vmem:[%s0 + $0x10] sm:$0xff]
    %v60 = vld [vmem:[%s0 + $0x18] sm:$0xff]
    %v61 = vpack.c.bf16 %v58, %v57
    %v62 = vpack.c.bf16 %v60, %v59
    %v63 = vld [vmem:[%s5] sm:$0xff]
    %v64 = vld [vmem:[%s5 + $0x8] sm:$0xff]
    %v65 = vld [vmem:[%s5 + $0x10] sm:$0x77]
    %v66 = vld [vmem:[%s6] sm:$0x3]
    %v68 = vlaneseq
    %v69 = vshrl.u32 %v68, 7
    %v70 = vsub.s32 0, %v69
    %v71 = vrot.slane %v66, %v70
    %v72 = vlaneseq
    %v73 = vshrl.u32 %v72, 7
    %v74 = vsub.s32 1, %v73
    %v75 = vrot.slane %v66, %v74
    %v81 = vunpack.c.l.b16 %v63
    %v82 = vunpack.c.h.b16 %v63
    %v83 = vunpack.c.l.b16 %v64
    %v84 = vunpack.c.h.b16 %v64
    %v85 = vunpack.c.l.b16 %v65
    %v86 = vunpack.c.h.b16 %v65
    %v87 = vpack.c.b16 %v83, %v81
    %v88 = vpack.c.b16 %v84, %v82
    %v89 = vpack.c.b16 %v85, %v85
    %v90 = vpack.c.b16 %v86, %v86
    %vm93 = vcmask 171008
    %v95 = vsel %vm93, %v61, 0
    %v98 = vsel %vm93, %v62, 0
    %vm100 = vcmask 1041408
    %vm101 = vcmask 1042432
    %v102 = vsel %vm100, 4294967295, 65535
    %v103 = vsel %vm101, %v102, 0
    %v105 = vand.u32 %v89, %v103
    %v108 = vand.u32 %v90, %v103
    %110 = vmatprep.subr.bf16.mxu0 0
    %111 = vmatpush1.bf16.msra.mxu0 0
    %112 = vmatprep.subr.bf16.mxu0 0
    %113 = vmatpush1.bf16.msra.mxu0 0
    %114 = vmatprep.subr.bf16.mxu0 0
    %115 = vmatpush1.bf16.msra.mxu0 0
    %116 = vmatprep.subr.bf16.mxu0 0
    %117 = vmatpush1.bf16.msra.mxu0 0
    %118 = vmatprep.subr.bf16.mxu0 0
    %119 = vmatpush1.bf16.msra.mxu0 0
    %120 = vmatprep.subr.bf16.mxu0 0
    %121 = vmatpush1.bf16.msra.mxu0 0
    %122 = vmatprep.subr.bf16.mxu0 %v108
    %123 = vmatpush1.bf16.msra.mxu0 %v105
    %124 = vmatprep.subr.bf16.mxu0 %v88
    %125 = vmatpush1.bf16.msra.mxu0 %v87
    %126 = vmatprep.subr.bf16.mxu0 0
    %127 = vmatpush2.bf16.msra.mxu0 0
    %128 = vmatprep.subr.bf16.mxu0 0
    %129 = vmatpush2.bf16.msra.mxu0 0
    %130 = vmatprep.subr.bf16.mxu0 0
    %131 = vmatpush2.bf16.msra.mxu0 0
    %132 = vmatprep.subr.bf16.mxu0 0
    %133 = vmatpush2.bf16.msra.mxu0 0
    %134 = vmatprep.subr.bf16.mxu0 0
    %135 = vmatpush2.bf16.msra.mxu0 0
    %136 = vmatprep.subr.bf16.mxu0 0
    %137 = vmatpush2.bf16.msra.mxu0 0
    %138 = vmatprep.subr.bf16.mxu0 0
    %139 = vmatpush2.bf16.msra.mxu0 0
    %140 = vmatprep.subr.bf16.mxu0 0
    %141 = vmatpush2.bf16.msra.mxu0 0
    %142 = vmatprep.mubr.bf16.mxu0 0
    %143 = vmatmul.mubr.bf16.gmra.mxu0 %v95
    %v144 = vpop.f32.mrf.mxu0
    %v145 = vadd.f32 %v71, %v144
    %v146 = vpop.f32.mrf.mxu0
    %v147 = vadd.f32 %v75, %v146
    %v148 = vpop.f32.mrf.mxu0
    %v149 = vadd.f32 %v71, %v148
    %v150 = vpop.f32.mrf.mxu0
    %v151 = vadd.f32 %v75, %v150
    %152 = vmatprep.mubr.bf16.mxu0 0
    %153 = vmatmul.mubr.bf16.gmra.mxu0 %v98
    %v154 = vpop.f32.mrf.mxu0
    %v155 = vadd.f32 %v71, %v154
    %v156 = vpop.f32.mrf.mxu0
    %v157 = vadd.f32 %v75, %v156
    %v158 = vpop.f32.mrf.mxu0
    %v159 = vadd.f32 %v71, %v158
    %v160 = vpop.f32.mrf.mxu0
    %v161 = vadd.f32 %v75, %v160
    %162 = vdwg.mxu0
    %v163 = vld [vmem:[%s1] sm:$0xf]
    %v164 = vld [vmem:[%s2] sm:$0xf]
    %v165 = vld [vmem:[%s3] sm:$0xf]
    %v166 = vld [vmem:[%s4] sm:$0xf]
    %v167 = vld [vmem:[%s7] sm:$0xff]
    %v168 = vld [vmem:[%s7 + $0x8] sm:$0xff]
    %v169 = vld [vmem:[%s7 + $0x10] sm:$0xff]
    %v170 = vld [vmem:[%s7 + $0x18] sm:$0xff]
    %v171 = vld [vmem:[%s7 + $0x20] sm:$0xff]
    %v172 = vld [vmem:[%s7 + $0x28] sm:$0xff]
    %v173 = vld [vmem:[%s7 + $0x30] sm:$0xff]
    %v174 = vld [vmem:[%s7 + $0x38] sm:$0xff]
    %v175 = vld [vmem:[%s7 + $0x40] sm:$0xff]
    %v176 = vld [vmem:[%s7 + $0x48] sm:$0xff]
    %v177 = vld [vmem:[%s7 + $0x50] sm:$0xff]
    %v178 = vld [vmem:[%s7 + $0x58] sm:$0xff]
    %v179 = vld [vmem:[%s7 + $0x60] sm:$0xff]
    %v180 = vld [vmem:[%s7 + $0x68] sm:$0xff]
    %v181 = vld [vmem:[%s7 + $0x70] sm:$0xff]
    %v182 = vld [vmem:[%s7 + $0x78] sm:$0xff]
    %v183 = vld [vmem:[#allocation2] sm:$0xff]
    %v184 = vld [vmem:[#allocation2 + $0x8] sm:$0xff]
    %v185 = vld [vmem:[#allocation2 + $0x10] sm:$0xff]
    %v186 = vld [vmem:[#allocation2 + $0x18] sm:$0xff]
    %v187 = vld [vmem:[#allocation2 + $0x20] sm:$0xff]
    %v188 = vld [vmem:[#allocation2 + $0x28] sm:$0xff]
    %v189 = vld [vmem:[#allocation2 + $0x30] sm:$0xff]
    %v190 = vld [vmem:[#allocation2 + $0x38] sm:$0xff]
    %v191 = vld [vmem:[#allocation2 + $0x40] sm:$0xff]
    %v192 = vld [vmem:[#allocation2 + $0x48] sm:$0xff]
    %v193 = vld [vmem:[#allocation2 + $0x50] sm:$0xff]
    %v194 = vld [vmem:[#allocation2 + $0x58] sm:$0xff]
    %v195 = vld [vmem:[#allocation2 + $0x60] sm:$0xff]
    %v196 = vld [vmem:[#allocation2 + $0x68] sm:$0xff]
    %v197 = vld [vmem:[#allocation2 + $0x70] sm:$0xff]
    %v198 = vld [vmem:[#allocation2 + $0x78] sm:$0xff]
    %v199 = vld [vmem:[%s9] sm:$0x3]
    %v200 = vlaneseq
    %v201 = vand.u32 %v200, 127
    %v202 = vadd.s32 %v201, 128
    %vm203 = vcmp.ge.s32.totalorder %v201, 128
    %vm204 = vcmp.ge.s32.totalorder %v202, 128
    %vm205 = vcmp.lt.s32.totalorder %v201, 192
    %vm206 = vcmp.lt.s32.totalorder %v202, 192
    %vm207 = vmand %vm203, %vm205
    %vm208 = vmand %vm204, %vm206
    %v209 = vsel %vm207, 1.0, 0.5
    %v210 = vsel %vm208, 1.0, 0.5
    %v211 = vsel %vm207, 0.0, 0.5
    %v212 = vsel %vm208, 0.0, 0.5
    %vm213 = vcmp.lt.s32.totalorder %v201, 64
    %v214 = vpack.c.bf16 %v163, %v163
    %v231 = vunpack.c.l.b16 %v167
    %v232 = vunpack.c.h.b16 %v167
    %v233 = vunpack.c.l.b16 %v168
    %v234 = vunpack.c.h.b16 %v168
    %v235 = vunpack.c.l.b16 %v169
    %v236 = vunpack.c.h.b16 %v169
    %v237 = vunpack.c.l.b16 %v170
    %v238 = vunpack.c.h.b16 %v170
    %v239 = vunpack.c.l.b16 %v171
    %v240 = vunpack.c.h.b16 %v171
    %v241 = vunpack.c.l.b16 %v172
    %v242 = vunpack.c.h.b16 %v172
    %v243 = vunpack.c.l.b16 %v173
    %v244 = vunpack.c.h.b16 %v173
    %v245 = vunpack.c.l.b16 %v174
    %v246 = vunpack.c.h.b16 %v174
    %v247 = vunpack.c.l.b16 %v175
    %v248 = vunpack.c.h.b16 %v175
    %v249 = vunpack.c.l.b16 %v176
    %v250 = vunpack.c.h.b16 %v176
    %v251 = vunpack.c.l.b16 %v177
    %v252 = vunpack.c.h.b16 %v177
    %v253 = vunpack.c.l.b16 %v178
    %v254 = vunpack.c.h.b16 %v178
    %v255 = vunpack.c.l.b16 %v179
    %v256 = vunpack.c.h.b16 %v179
    %v257 = vunpack.c.l.b16 %v180
    %v258 = vunpack.c.h.b16 %v180
    %v259 = vunpack.c.l.b16 %v181
    %v260 = vunpack.c.h.b16 %v181
    %v261 = vunpack.c.l.b16 %v182
    %v262 = vunpack.c.h.b16 %v182
    %v263 = vpack.c.b16 %v233, %v231
    %v264 = vpack.c.b16 %v234, %v232
    %v265 = vpack.c.b16 %v237, %v235
    %v266 = vpack.c.b16 %v238, %v236
    %v267 = vpack.c.b16 %v241, %v239
    %v268 = vpack.c.b16 %v242, %v240
    %v269 = vpack.c.b16 %v245, %v243
    %v270 = vpack.c.b16 %v246, %v244
    %v271 = vpack.c.b16 %v249, %v247
    %v272 = vpack.c.b16 %v250, %v248
    %v273 = vpack.c.b16 %v253, %v251
    %v274 = vpack.c.b16 %v254, %v252
    %v275 = vpack.c.b16 %v257, %v255
    %v276 = vpack.c.b16 %v258, %v256
    %v277 = vpack.c.b16 %v261, %v259
    %v278 = vpack.c.b16 %v262, %v260
    %295 = vmatprep.subr.bf16.mxu0 %v278
    %296 = vmatpush1.bf16.msra.mxu0 %v277
    %297 = vmatprep.subr.bf16.mxu0 %v276
    %298 = vmatpush1.bf16.msra.mxu0 %v275
    %299 = vmatprep.subr.bf16.mxu0 %v274
    %300 = vmatpush1.bf16.msra.mxu0 %v273
    %301 = vmatprep.subr.bf16.mxu0 %v272
    %302 = vmatpush1.bf16.msra.mxu0 %v271
    %303 = vmatprep.subr.bf16.mxu0 %v270
    %304 = vmatpush1.bf16.msra.mxu0 %v269
    %305 = vmatprep.subr.bf16.mxu0 %v268
    %306 = vmatpush1.bf16.msra.mxu0 %v267
    %307 = vmatprep.subr.bf16.mxu0 %v266
    %308 = vmatpush1.bf16.msra.mxu0 %v265
    %309 = vmatprep.subr.bf16.mxu0 %v264
    %310 = vmatpush1.bf16.msra.mxu0 %v263
    %311 = vmatprep.subr.bf16.mxu0 0
    %312 = vmatpush2.bf16.msra.mxu0 0
    %313 = vmatprep.subr.bf16.mxu0 0
    %314 = vmatpush2.bf16.msra.mxu0 0
    %315 = vmatprep.subr.bf16.mxu0 0
    %316 = vmatpush2.bf16.msra.mxu0 0
    %317 = vmatprep.subr.bf16.mxu0 0
    %318 = vmatpush2.bf16.msra.mxu0 0
    %319 = vmatprep.subr.bf16.mxu0 0
    %320 = vmatpush2.bf16.msra.mxu0 0
    %321 = vmatprep.subr.bf16.mxu0 0
    %322 = vmatpush2.bf16.msra.mxu0 0
    %323 = vmatprep.subr.bf16.mxu0 0
    %324 = vmatpush2.bf16.msra.mxu0 0
    %325 = vmatprep.subr.bf16.mxu0 0
    %326 = vmatpush2.bf16.msra.mxu0 0
    %327 = vmatprep.mubr.bf16.mxu0 0
    %328 = vmatmul.mubr.bf16.gmra.mxu0 %v214
    %v329 = vpop.f32.mrf.mxu0
    %v330 = vadd.f32 0.0, %v329
    %v331 = vpop.f32.mrf.mxu0
    %v332 = vadd.f32 0.0, %v331
    %v333 = vpop.f32.mrf.mxu0
    %v334 = vpop.f32.mrf.mxu0
    %335 = vdwg.mxu0
    %v336 = vadd.f32 %v145, %v330
    %v337 = vadd.f32 %v147, %v332
    %v338 = vmul.f32 %v336, %v209
    %v339 = vmul.f32 %v337, %v210
    %v340 = vtanh.pop %v338
    %v341 = vtanh.pop %v339
    %v342 = vmul.f32 %v340, %v209
    %v343 = vmul.f32 %v341, %v210
    %v344 = vadd.f32 %v342, %v211
    %v345 = vadd.f32 %v343, %v212
    %v346 = vmul.f32 %v344, %v345
    %v347 = vmul.f32 %v344, %v164
    %348 = vrot.lane.b32.xlu0 %v347, 64
    %v349 = vpop.permute.xlu0 %348
    %v350 = vadd.f32 %v346, %v349
    %351 = vrot.lane.b32.xlu0 %v350, 64
    %v352 = vpop.permute.xlu0 %351
    %v353 = vtanh.pop %v350
    %354 = vrot.lane.b32.xlu0 %v345, 64
    %v355 = vpop.permute.xlu0 %354
    %v356 = vmul.f32 %v355, %v353
    %v357 = vsel %vm213, %v356, %v165
    %v358 = vpack.c.bf16 %v357, %v357
    %v360 = vlaneseq
    %v361 = vshrl.u32 %v360, 7
    %v362 = vsub.s32 0, %v361
    %v363 = vrot.slane %v199, %v362
    %v364 = vlaneseq
    %v365 = vshrl.u32 %v364, 7
    %v366 = vsub.s32 1, %v365
    %v367 = vrot.slane %v199, %v366
    %v386 = vunpack.c.l.b16 %v183
    %v387 = vunpack.c.h.b16 %v183
    %v388 = vunpack.c.l.b16 %v184
    %v389 = vunpack.c.h.b16 %v184
    %v390 = vunpack.c.l.b16 %v185
    %v391 = vunpack.c.h.b16 %v185
    %v392 = vunpack.c.l.b16 %v186
    %v393 = vunpack.c.h.b16 %v186
    %v394 = vunpack.c.l.b16 %v187
    %v395 = vunpack.c.h.b16 %v187
    %v396 = vunpack.c.l.b16 %v188
    %v397 = vunpack.c.h.b16 %v188
    %v398 = vunpack.c.l.b16 %v189
    %v399 = vunpack.c.h.b16 %v189
    %v400 = vunpack.c.l.b16 %v190
    %v401 = vunpack.c.h.b16 %v190
    %v402 = vunpack.c.l.b16 %v191
    %v403 = vunpack.c.h.b16 %v191
    %v404 = vunpack.c.l.b16 %v192
    %v405 = vunpack.c.h.b16 %v192
    %v406 = vunpack.c.l.b16 %v193
    %v407 = vunpack.c.h.b16 %v193
    %v408 = vunpack.c.l.b16 %v194
    %v409 = vunpack.c.h.b16 %v194
    %v410 = vunpack.c.l.b16 %v195
    %v411 = vunpack.c.h.b16 %v195
    %v412 = vunpack.c.l.b16 %v196
    %v413 = vunpack.c.h.b16 %v196
    %v414 = vunpack.c.l.b16 %v197
    %v415 = vunpack.c.h.b16 %v197
    %v416 = vunpack.c.l.b16 %v198
    %v417 = vunpack.c.h.b16 %v198
    %v418 = vpack.c.b16 %v388, %v386
    %v419 = vpack.c.b16 %v389, %v387
    %v420 = vpack.c.b16 %v392, %v390
    %v421 = vpack.c.b16 %v393, %v391
    %v422 = vpack.c.b16 %v396, %v394
    %v423 = vpack.c.b16 %v397, %v395
    %v424 = vpack.c.b16 %v400, %v398
    %v425 = vpack.c.b16 %v401, %v399
    %v426 = vpack.c.b16 %v404, %v402
    %v427 = vpack.c.b16 %v405, %v403
    %v428 = vpack.c.b16 %v408, %v406
    %v429 = vpack.c.b16 %v409, %v407
    %v430 = vpack.c.b16 %v412, %v410
    %v431 = vpack.c.b16 %v413, %v411
    %v432 = vpack.c.b16 %v416, %v414
    %v433 = vpack.c.b16 %v417, %v415
    %450 = vmatprep.subr.bf16.mxu0 %v433
    %451 = vmatpush1.bf16.msra.mxu0 %v432
    %452 = vmatprep.subr.bf16.mxu0 %v431
    %453 = vmatpush1.bf16.msra.mxu0 %v430
    %454 = vmatprep.subr.bf16.mxu0 %v429
    %455 = vmatpush1.bf16.msra.mxu0 %v428
    %456 = vmatprep.subr.bf16.mxu0 %v427
    %457 = vmatpush1.bf16.msra.mxu0 %v426
    %458 = vmatprep.subr.bf16.mxu0 %v425
    %459 = vmatpush1.bf16.msra.mxu0 %v424
    %460 = vmatprep.subr.bf16.mxu0 %v423
    %461 = vmatpush1.bf16.msra.mxu0 %v422
    %462 = vmatprep.subr.bf16.mxu0 %v421
    %463 = vmatpush1.bf16.msra.mxu0 %v420
    %464 = vmatprep.subr.bf16.mxu0 %v419
    %465 = vmatpush1.bf16.msra.mxu0 %v418
    %466 = vmatprep.subr.bf16.mxu0 0
    %467 = vmatpush2.bf16.msra.mxu0 0
    %468 = vmatprep.subr.bf16.mxu0 0
    %469 = vmatpush2.bf16.msra.mxu0 0
    %470 = vmatprep.subr.bf16.mxu0 0
    %471 = vmatpush2.bf16.msra.mxu0 0
    %472 = vmatprep.subr.bf16.mxu0 0
    %473 = vmatpush2.bf16.msra.mxu0 0
    %474 = vmatprep.subr.bf16.mxu0 0
    %475 = vmatpush2.bf16.msra.mxu0 0
    %476 = vmatprep.subr.bf16.mxu0 0
    %477 = vmatpush2.bf16.msra.mxu0 0
    %478 = vmatprep.subr.bf16.mxu0 0
    %479 = vmatpush2.bf16.msra.mxu0 0
    %480 = vmatprep.subr.bf16.mxu0 0
    %481 = vmatpush2.bf16.msra.mxu0 0
    %482 = vmatprep.mubr.bf16.mxu0 0
    %483 = vmatmul.mubr.bf16.gmra.mxu0 %v358
    %v484 = vpop.f32.mrf.mxu0
    %v485 = vadd.f32 %v363, %v484
    %v486 = vpop.f32.mrf.mxu0
    %v487 = vadd.f32 %v367, %v486
    %v488 = vpop.f32.mrf.mxu0
    %v489 = vpop.f32.mrf.mxu0
    %490 = vdwg.mxu0
    %v491 = vmul.f32 %v485, %v209
    %v492 = vmul.f32 %v487, %v210
    %v493 = vtanh.pop %v491
    %v494 = vtanh.pop %v492
    %v495 = vmul.f32 %v493, %v209
    %v496 = vmul.f32 %v494, %v210
    %v497 = vadd.f32 %v495, %v211
    %v498 = vadd.f32 %v496, %v212
    %v499 = vmul.f32 %v497, %v498
    %v500 = vmul.f32 %v497, %v166
    %501 = vrot.lane.b32.xlu0 %v500, 64
    %v502 = vpop.permute.xlu0 %501
    %v503 = vadd.f32 %v499, %v502
    %504 = vrot.lane.b32.xlu0 %v503, 64
    %v505 = vpop.permute.xlu0 %504
    %v506 = vtanh.pop %v503
    %507 = vrot.lane.b32.xlu0 %v506, 64
    %v508 = vpop.permute.xlu0 %507
    %v509 = vmul.f32 %v498, %v508
    %v510 = vpack.c.bf16 %v356, %v356
    %511 = vmatprep.subr.bf16.mxu0 %v278
    %512 = vmatpush1.bf16.msra.mxu0 %v277
    %513 = vmatprep.subr.bf16.mxu0 %v276
    %514 = vmatpush1.bf16.msra.mxu0 %v275
    %515 = vmatprep.subr.bf16.mxu0 %v274
    %516 = vmatpush1.bf16.msra.mxu0 %v273
    %517 = vmatprep.subr.bf16.mxu0 %v272
    %518 = vmatpush1.bf16.msra.mxu0 %v271
    %519 = vmatprep.subr.bf16.mxu0 %v270
    %520 = vmatpush1.bf16.msra.mxu0 %v269
    %521 = vmatprep.subr.bf16.mxu0 %v268
    %522 = vmatpush1.bf16.msra.mxu0 %v267
    %523 = vmatprep.subr.bf16.mxu0 %v266
    %524 = vmatpush1.bf16.msra.mxu0 %v265
    %525 = vmatprep.subr.bf16.mxu0 %v264
    %526 = vmatpush1.bf16.msra.mxu0 %v263
    %527 = vmatprep.subr.bf16.mxu0 0
    %528 = vmatpush2.bf16.msra.mxu0 0
    %529 = vmatprep.subr.bf16.mxu0 0
    %530 = vmatpush2.bf16.msra.mxu0 0
    %531 = vmatprep.subr.bf16.mxu0 0
    %532 = vmatpush2.bf16.msra.mxu0 0
    %533 = vmatprep.subr.bf16.mxu0 0
    %534 = vmatpush2.bf16.msra.mxu0 0
    %535 = vmatprep.subr.bf16.mxu0 0
    %536 = vmatpush2.bf16.msra.mxu0 0
    %537 = vmatprep.subr.bf16.mxu0 0
    %538 = vmatpush2.bf16.msra.mxu0 0
    %539 = vmatprep.subr.bf16.mxu0 0
    %540 = vmatpush2.bf16.msra.mxu0 0
    %541 = vmatprep.subr.bf16.mxu0 0
    %542 = vmatpush2.bf16.msra.mxu0 0
    %543 = vmatprep.mubr.bf16.mxu0 0
    %544 = vmatmul.mubr.bf16.gmra.mxu0 %v510
    %v545 = vpop.f32.mrf.mxu0
    %v546 = vadd.f32 0.0, %v545
    %v547 = vpop.f32.mrf.mxu0
    %v548 = vadd.f32 0.0, %v547
    %v549 = vpop.f32.mrf.mxu0
    %v550 = vpop.f32.mrf.mxu0
    %551 = vdwg.mxu0
    %v554 = vrot.slane %v546, 4
    %v555 = vrot.slane %v548, 4
    %v558 = vadd.f32 %v145, %v554
    %v559 = vadd.f32 %v147, %v555
    %v560 = vmul.f32 %v558, %v209
    %v561 = vmul.f32 %v559, %v210
    %v562 = vtanh.pop %v560
    %v563 = vtanh.pop %v561
    %v564 = vmul.f32 %v562, %v209
    %v565 = vmul.f32 %v563, %v210
    %v566 = vadd.f32 %v564, %v211
    %v567 = vadd.f32 %v565, %v212
    %v568 = vmul.f32 %v566, %v567
    %v570 = vrot.slane %v352, 4
    %v572 = vmul.f32 %v566, %v570
    %v574 = vrot.slane %v572, 4
    %576 = vrot.lane.b32.xlu0 %v574, 64
    %v577 = vpop.permute.xlu0 %576
    %v579 = vrot.slane %v577, 4
    %v581 = vadd.f32 %v568, %v579
    %v583 = vrot.slane %v581, 4
    %585 = vrot.lane.b32.xlu0 %v583, 64
    %v586 = vpop.permute.xlu0 %585
    %v587 = vtanh.pop %v581
    %v589 = vrot.slane %v567, 4
    %591 = vrot.lane.b32.xlu0 %v589, 64
    %v592 = vpop.permute.xlu0 %591
    %v594 = vrot.slane %v587, 4
    %v596 = vmul.f32 %v592, %v594
    %v597 = vsel %vm213, %v596, %v509
    %v598 = vpack.c.bf16 %v597, %v597
    %599 = vmatprep.subr.bf16.mxu0 %v433
    %600 = vmatpush1.bf16.msra.mxu0 %v432
    %601 = vmatprep.subr.bf16.mxu0 %v431
    %602 = vmatpush1.bf16.msra.mxu0 %v430
    %603 = vmatprep.subr.bf16.mxu0 %v429
    %604 = vmatpush1.bf16.msra.mxu0 %v428
    %605 = vmatprep.subr.bf16.mxu0 %v427
    %606 = vmatpush1.bf16.msra.mxu0 %v426
    %607 = vmatprep.subr.bf16.mxu0 %v425
    %608 = vmatpush1.bf16.msra.mxu0 %v424
    %609 = vmatprep.subr.bf16.mxu0 %v423
    %610 = vmatpush1.bf16.msra.mxu0 %v422
    %611 = vmatprep.subr.bf16.mxu0 %v421
    %612 = vmatpush1.bf16.msra.mxu0 %v420
    %613 = vmatprep.subr.bf16.mxu0 %v419
    %614 = vmatpush1.bf16.msra.mxu0 %v418
    %615 = vmatprep.subr.bf16.mxu0 0
    %616 = vmatpush2.bf16.msra.mxu0 0
    %617 = vmatprep.subr.bf16.mxu0 0
    %618 = vmatpush2.bf16.msra.mxu0 0
    %619 = vmatprep.subr.bf16.mxu0 0
    %620 = vmatpush2.bf16.msra.mxu0 0
    %621 = vmatprep.subr.bf16.mxu0 0
    %622 = vmatpush2.bf16.msra.mxu0 0
    %623 = vmatprep.subr.bf16.mxu0 0
    %624 = vmatpush2.bf16.msra.mxu0 0
    %625 = vmatprep.subr.bf16.mxu0 0
    %626 = vmatpush2.bf16.msra.mxu0 0
    %627 = vmatprep.subr.bf16.mxu0 0
    %628 = vmatpush2.bf16.msra.mxu0 0
    %629 = vmatprep.subr.bf16.mxu0 0
    %630 = vmatpush2.bf16.msra.mxu0 0
    %631 = vmatprep.mubr.bf16.mxu0 0
    %632 = vmatmul.mubr.bf16.gmra.mxu0 %v598
    %v633 = vpop.f32.mrf.mxu0
    %v634 = vadd.f32 %v363, %v633
    %v635 = vpop.f32.mrf.mxu0
    %v636 = vadd.f32 %v367, %v635
    %v637 = vpop.f32.mrf.mxu0
    %v638 = vpop.f32.mrf.mxu0
    %639 = vdwg.mxu0
    %v640 = vmul.f32 %v634, %v209
    %v641 = vmul.f32 %v636, %v210
    %v642 = vtanh.pop %v640
    %v643 = vtanh.pop %v641
    %v644 = vmul.f32 %v642, %v209
    %v645 = vmul.f32 %v643, %v210
    %v646 = vadd.f32 %v644, %v211
    %v647 = vadd.f32 %v645, %v212
    %v648 = vmul.f32 %v646, %v647
    %v649 = vmul.f32 %v646, %v505
    %650 = vrot.lane.b32.xlu0 %v649, 64
    %v651 = vpop.permute.xlu0 %650
    %v652 = vadd.f32 %v648, %v651
    %653 = vrot.lane.b32.xlu0 %v652, 64
    %v654 = vpop.permute.xlu0 %653
    %v655 = vtanh.pop %v652
    %656 = vrot.lane.b32.xlu0 %v655, 64
    %v657 = vpop.permute.xlu0 %656
    %v658 = vmul.f32 %v647, %v657
    %v659 = vpack.c.bf16 %v596, %v596
    %660 = vmatprep.subr.bf16.mxu0 %v278
    %661 = vmatpush1.bf16.msra.mxu0 %v277
    %662 = vmatprep.subr.bf16.mxu0 %v276
    %663 = vmatpush1.bf16.msra.mxu0 %v275
    %664 = vmatprep.subr.bf16.mxu0 %v274
    %665 = vmatpush1.bf16.msra.mxu0 %v273
    %666 = vmatprep.subr.bf16.mxu0 %v272
    %667 = vmatpush1.bf16.msra.mxu0 %v271
    %668 = vmatprep.subr.bf16.mxu0 %v270
    %669 = vmatpush1.bf16.msra.mxu0 %v269
    %670 = vmatprep.subr.bf16.mxu0 %v268
    %671 = vmatpush1.bf16.msra.mxu0 %v267
    %672 = vmatprep.subr.bf16.mxu0 %v266
    %673 = vmatpush1.bf16.msra.mxu0 %v265
    %674 = vmatprep.subr.bf16.mxu0 %v264
    %675 = vmatpush1.bf16.msra.mxu0 %v263
    %676 = vmatprep.subr.bf16.mxu0 0
    %677 = vmatpush2.bf16.msra.mxu0 0
    %678 = vmatprep.subr.bf16.mxu0 0
    %679 = vmatpush2.bf16.msra.mxu0 0
    %680 = vmatprep.subr.bf16.mxu0 0
    %681 = vmatpush2.bf16.msra.mxu0 0
    %682 = vmatprep.subr.bf16.mxu0 0
    %683 = vmatpush2.bf16.msra.mxu0 0
    %684 = vmatprep.subr.bf16.mxu0 0
    %685 = vmatpush2.bf16.msra.mxu0 0
    %686 = vmatprep.subr.bf16.mxu0 0
    %687 = vmatpush2.bf16.msra.mxu0 0
    %688 = vmatprep.subr.bf16.mxu0 0
    %689 = vmatpush2.bf16.msra.mxu0 0
    %690 = vmatprep.subr.bf16.mxu0 0
    %691 = vmatpush2.bf16.msra.mxu0 0
    %692 = vmatprep.mubr.bf16.mxu0 0
    %693 = vmatmul.mubr.bf16.gmra.mxu0 %v659
    %v694 = vpop.f32.mrf.mxu0
    %v695 = vadd.f32 0.0, %v694
    %v696 = vpop.f32.mrf.mxu0
    %v697 = vadd.f32 0.0, %v696
    %v698 = vpop.f32.mrf.mxu0
    %v699 = vpop.f32.mrf.mxu0
    %700 = vdwg.mxu0
    %v701 = vadd.f32 %v149, %v695
    %v702 = vadd.f32 %v151, %v697
    %v703 = vmul.f32 %v701, %v209
    %v704 = vmul.f32 %v702, %v210
    %v705 = vtanh.pop %v703
    %v706 = vtanh.pop %v704
    %v707 = vmul.f32 %v705, %v209
    %v708 = vmul.f32 %v706, %v210
    %v709 = vadd.f32 %v707, %v211
    %v710 = vadd.f32 %v708, %v212
    %v711 = vmul.f32 %v709, %v710
    %v712 = vmul.f32 %v709, %v586
    %713 = vrot.lane.b32.xlu0 %v712, 64
    %v714 = vpop.permute.xlu0 %713
    %v715 = vadd.f32 %v711, %v714
    %716 = vrot.lane.b32.xlu0 %v715, 64
    %v717 = vpop.permute.xlu0 %716
    %v718 = vtanh.pop %v715
    %719 = vrot.lane.b32.xlu0 %v710, 64
    %v720 = vpop.permute.xlu0 %719
    %v721 = vmul.f32 %v720, %v718
    %v722 = vsel %vm213, %v721, %v658
    %v723 = vpack.c.bf16 %v722, %v722
    %724 = vmatprep.subr.bf16.mxu0 %v433
    %725 = vmatpush1.bf16.msra.mxu0 %v432
    %726 = vmatprep.subr.bf16.mxu0 %v431
    %727 = vmatpush1.bf16.msra.mxu0 %v430
    %728 = vmatprep.subr.bf16.mxu0 %v429
    %729 = vmatpush1.bf16.msra.mxu0 %v428
    %730 = vmatprep.subr.bf16.mxu0 %v427
    %731 = vmatpush1.bf16.msra.mxu0 %v426
    %732 = vmatprep.subr.bf16.mxu0 %v425
    %733 = vmatpush1.bf16.msra.mxu0 %v424
    %734 = vmatprep.subr.bf16.mxu0 %v423
    %735 = vmatpush1.bf16.msra.mxu0 %v422
    %736 = vmatprep.subr.bf16.mxu0 %v421
    %737 = vmatpush1.bf16.msra.mxu0 %v420
    %738 = vmatprep.subr.bf16.mxu0 %v419
    %739 = vmatpush1.bf16.msra.mxu0 %v418
    %740 = vmatprep.subr.bf16.mxu0 0
    %741 = vmatpush2.bf16.msra.mxu0 0
    %742 = vmatprep.subr.bf16.mxu0 0
    %743 = vmatpush2.bf16.msra.mxu0 0
    %744 = vmatprep.subr.bf16.mxu0 0
    %745 = vmatpush2.bf16.msra.mxu0 0
    %746 = vmatprep.subr.bf16.mxu0 0
    %747 = vmatpush2.bf16.msra.mxu0 0
    %748 = vmatprep.subr.bf16.mxu0 0
    %749 = vmatpush2.bf16.msra.mxu0 0
    %750 = vmatprep.subr.bf16.mxu0 0
    %751 = vmatpush2.bf16.msra.mxu0 0
    %752 = vmatprep.subr.bf16.mxu0 0
    %753 = vmatpush2.bf16.msra.mxu0 0
    %754 = vmatprep.subr.bf16.mxu0 0
    %755 = vmatpush2.bf16.msra.mxu0 0
    %756 = vmatprep.mubr.bf16.mxu0 0
    %757 = vmatmul.mubr.bf16.gmra.mxu0 %v723
    %v758 = vpop.f32.mrf.mxu0
    %v759 = vadd.f32 %v363, %v758
    %v760 = vpop.f32.mrf.mxu0
    %v761 = vadd.f32 %v367, %v760
    %v762 = vpop.f32.mrf.mxu0
    %v763 = vpop.f32.mrf.mxu0
    %764 = vdwg.mxu0
    %v765 = vmul.f32 %v759, %v209
    %v766 = vmul.f32 %v761, %v210
    %v767 = vtanh.pop %v765
    %v768 = vtanh.pop %v766
    %v769 = vmul.f32 %v767, %v209
    %v770 = vmul.f32 %v768, %v210
    %v771 = vadd.f32 %v769, %v211
    %v772 = vadd.f32 %v770, %v212
    %v773 = vmul.f32 %v771, %v772
    %v774 = vmul.f32 %v771, %v654
    %775 = vrot.lane.b32.xlu0 %v774, 64
    %v776 = vpop.permute.xlu0 %775
    %v777 = vadd.f32 %v773, %v776
    %778 = vrot.lane.b32.xlu0 %v777, 64
    %v779 = vpop.permute.xlu0 %778
    %v780 = vtanh.pop %v777
    %781 = vrot.lane.b32.xlu0 %v780, 64
    %v782 = vpop.permute.xlu0 %781
    %v783 = vmul.f32 %v772, %v782
    %v784 = vpack.c.bf16 %v721, %v721
    %785 = vmatprep.subr.bf16.mxu0 %v278
    %786 = vmatpush1.bf16.msra.mxu0 %v277
    %787 = vmatprep.subr.bf16.mxu0 %v276
    %788 = vmatpush1.bf16.msra.mxu0 %v275
    %789 = vmatprep.subr.bf16.mxu0 %v274
    %790 = vmatpush1.bf16.msra.mxu0 %v273
    %791 = vmatprep.subr.bf16.mxu0 %v272
    %792 = vmatpush1.bf16.msra.mxu0 %v271
    %793 = vmatprep.subr.bf16.mxu0 %v270
    %794 = vmatpush1.bf16.msra.mxu0 %v269
    %795 = vmatprep.subr.bf16.mxu0 %v268
    %796 = vmatpush1.bf16.msra.mxu0 %v267
    %797 = vmatprep.subr.bf16.mxu0 %v266
    %798 = vmatpush1.bf16.msra.mxu0 %v265
    %799 = vmatprep.subr.bf16.mxu0 %v264
    %800 = vmatpush1.bf16.msra.mxu0 %v263
    %801 = vmatprep.subr.bf16.mxu0 0
    %802 = vmatpush2.bf16.msra.mxu0 0
    %803 = vmatprep.subr.bf16.mxu0 0
    %804 = vmatpush2.bf16.msra.mxu0 0
    %805 = vmatprep.subr.bf16.mxu0 0
    %806 = vmatpush2.bf16.msra.mxu0 0
    %807 = vmatprep.subr.bf16.mxu0 0
    %808 = vmatpush2.bf16.msra.mxu0 0
    %809 = vmatprep.subr.bf16.mxu0 0
    %810 = vmatpush2.bf16.msra.mxu0 0
    %811 = vmatprep.subr.bf16.mxu0 0
    %812 = vmatpush2.bf16.msra.mxu0 0
    %813 = vmatprep.subr.bf16.mxu0 0
    %814 = vmatpush2.bf16.msra.mxu0 0
    %815 = vmatprep.subr.bf16.mxu0 0
    %816 = vmatpush2.bf16.msra.mxu0 0
    %817 = vmatprep.mubr.bf16.mxu0 0
    %818 = vmatmul.mubr.bf16.gmra.mxu0 %v784
    %v819 = vpop.f32.mrf.mxu0
    %v820 = vadd.f32 0.0, %v819
    %v821 = vpop.f32.mrf.mxu0
    %v822 = vadd.f32 0.0, %v821
    %v823 = vpop.f32.mrf.mxu0
    %v824 = vpop.f32.mrf.mxu0
    %825 = vdwg.mxu0
    %v828 = vrot.slane %v820, 4
    %v829 = vrot.slane %v822, 4
    %v832 = vadd.f32 %v149, %v828
    %v833 = vadd.f32 %v151, %v829
    %v834 = vmul.f32 %v832, %v209
    %v835 = vmul.f32 %v833, %v210
    %v836 = vtanh.pop %v834
    %v837 = vtanh.pop %v835
    %v838 = vmul.f32 %v836, %v209
    %v839 = vmul.f32 %v837, %v210
    %v840 = vadd.f32 %v838, %v211
    %v841 = vadd.f32 %v839, %v212
    %v842 = vmul.f32 %v840, %v841
    %v844 = vrot.slane %v717, 4
    %v846 = vmul.f32 %v840, %v844
    %v848 = vrot.slane %v846, 4
    %850 = vrot.lane.b32.xlu0 %v848, 64
    %v851 = vpop.permute.xlu0 %850
    %v853 = vrot.slane %v851, 4
    %v855 = vadd.f32 %v842, %v853
    %v857 = vrot.slane %v855, 4
    %859 = vrot.lane.b32.xlu0 %v857, 64
    %v860 = vpop.permute.xlu0 %859
    %v861 = vtanh.pop %v855
    %v863 = vrot.slane %v841, 4
    %865 = vrot.lane.b32.xlu0 %v863, 64
    %v866 = vpop.permute.xlu0 %865
    %v868 = vrot.slane %v861, 4
    %v870 = vmul.f32 %v866, %v868
    %v871 = vsel %vm213, %v870, %v783
    %v872 = vpack.c.bf16 %v871, %v871
    %873 = vmatprep.subr.bf16.mxu0 %v433
    %874 = vmatpush1.bf16.msra.mxu0 %v432
    %875 = vmatprep.subr.bf16.mxu0 %v431
    %876 = vmatpush1.bf16.msra.mxu0 %v430
    %877 = vmatprep.subr.bf16.mxu0 %v429
    %878 = vmatpush1.bf16.msra.mxu0 %v428
    %879 = vmatprep.subr.bf16.mxu0 %v427
    %880 = vmatpush1.bf16.msra.mxu0 %v426
    %881 = vmatprep.subr.bf16.mxu0 %v425
    %882 = vmatpush1.bf16.msra.mxu0 %v424
    %883 = vmatprep.subr.bf16.mxu0 %v423
    %884 = vmatpush1.bf16.msra.mxu0 %v422
    %885 = vmatprep.subr.bf16.mxu0 %v421
    %886 = vmatpush1.bf16.msra.mxu0 %v420
    %887 = vmatprep.subr.bf16.mxu0 %v419
    %888 = vmatpush1.bf16.msra.mxu0 %v418
    %889 = vmatprep.subr.bf16.mxu0 0
    %890 = vmatpush2.bf16.msra.mxu0 0
    %891 = vmatprep.subr.bf16.mxu0 0
    %892 = vmatpush2.bf16.msra.mxu0 0
    %893 = vmatprep.subr.bf16.mxu0 0
    %894 = vmatpush2.bf16.msra.mxu0 0
    %895 = vmatprep.subr.bf16.mxu0 0
    %896 = vmatpush2.bf16.msra.mxu0 0
    %897 = vmatprep.subr.bf16.mxu0 0
    %898 = vmatpush2.bf16.msra.mxu0 0
    %899 = vmatprep.subr.bf16.mxu0 0
    %900 = vmatpush2.bf16.msra.mxu0 0
    %901 = vmatprep.subr.bf16.mxu0 0
    %902 = vmatpush2.bf16.msra.mxu0 0
    %903 = vmatprep.subr.bf16.mxu0 0
    %904 = vmatpush2.bf16.msra.mxu0 0
    %905 = vmatprep.mubr.bf16.mxu0 0
    %906 = vmatmul.mubr.bf16.gmra.mxu0 %v872
    %v907 = vpop.f32.mrf.mxu0
    %v908 = vadd.f32 %v363, %v907
    %v909 = vpop.f32.mrf.mxu0
    %v910 = vadd.f32 %v367, %v909
    %v911 = vpop.f32.mrf.mxu0
    %v912 = vpop.f32.mrf.mxu0
    %913 = vdwg.mxu0
    %v914 = vmul.f32 %v908, %v209
    %v915 = vmul.f32 %v910, %v210
    %v916 = vtanh.pop %v914
    %v917 = vtanh.pop %v915
    %v918 = vmul.f32 %v916, %v209
    %v919 = vmul.f32 %v917, %v210
    %v920 = vadd.f32 %v918, %v211
    %v921 = vadd.f32 %v919, %v212
    %v922 = vmul.f32 %v920, %v921
    %v923 = vmul.f32 %v920, %v779
    %924 = vrot.lane.b32.xlu0 %v923, 64
    %v925 = vpop.permute.xlu0 %924
    %v926 = vadd.f32 %v922, %v925
    %927 = vrot.lane.b32.xlu0 %v926, 64
    %v928 = vpop.permute.xlu0 %927
    %v929 = vtanh.pop %v926
    %930 = vrot.lane.b32.xlu0 %v929, 64
    %v931 = vpop.permute.xlu0 %930
    %v932 = vmul.f32 %v921, %v931
    %v933 = vpack.c.bf16 %v870, %v870
    %934 = vmatprep.subr.bf16.mxu0 %v278
    %935 = vmatpush1.bf16.msra.mxu0 %v277
    %936 = vmatprep.subr.bf16.mxu0 %v276
    %937 = vmatpush1.bf16.msra.mxu0 %v275
    %938 = vmatprep.subr.bf16.mxu0 %v274
    %939 = vmatpush1.bf16.msra.mxu0 %v273
    %940 = vmatprep.subr.bf16.mxu0 %v272
    %941 = vmatpush1.bf16.msra.mxu0 %v271
    %942 = vmatprep.subr.bf16.mxu0 %v270
    %943 = vmatpush1.bf16.msra.mxu0 %v269
    %944 = vmatprep.subr.bf16.mxu0 %v268
    %945 = vmatpush1.bf16.msra.mxu0 %v267
    %946 = vmatprep.subr.bf16.mxu0 %v266
    %947 = vmatpush1.bf16.msra.mxu0 %v265
    %948 = vmatprep.subr.bf16.mxu0 %v264
    %949 = vmatpush1.bf16.msra.mxu0 %v263
    %950 = vmatprep.subr.bf16.mxu0 0
    %951 = vmatpush2.bf16.msra.mxu0 0
    %952 = vmatprep.subr.bf16.mxu0 0
    %953 = vmatpush2.bf16.msra.mxu0 0
    %954 = vmatprep.subr.bf16.mxu0 0
    %955 = vmatpush2.bf16.msra.mxu0 0
    %956 = vmatprep.subr.bf16.mxu0 0
    %957 = vmatpush2.bf16.msra.mxu0 0
    %958 = vmatprep.subr.bf16.mxu0 0
    %959 = vmatpush2.bf16.msra.mxu0 0
    %960 = vmatprep.subr.bf16.mxu0 0
    %961 = vmatpush2.bf16.msra.mxu0 0
    %962 = vmatprep.subr.bf16.mxu0 0
    %963 = vmatpush2.bf16.msra.mxu0 0
    %964 = vmatprep.subr.bf16.mxu0 0
    %965 = vmatpush2.bf16.msra.mxu0 0
    %966 = vmatprep.mubr.bf16.mxu0 0
    %967 = vmatmul.mubr.bf16.gmra.mxu0 %v933
    %v968 = vpop.f32.mrf.mxu0
    %v969 = vadd.f32 0.0, %v968
    %v970 = vpop.f32.mrf.mxu0
    %v971 = vadd.f32 0.0, %v970
    %v972 = vpop.f32.mrf.mxu0
    %v973 = vpop.f32.mrf.mxu0
    %974 = vdwg.mxu0
    %v975 = vadd.f32 %v155, %v969
    %v976 = vadd.f32 %v157, %v971
    %v977 = vmul.f32 %v975, %v209
    %v978 = vmul.f32 %v976, %v210
    %v979 = vtanh.pop %v977
    %v980 = vtanh.pop %v978
    %v981 = vmul.f32 %v979, %v209
    %v982 = vmul.f32 %v980, %v210
    %v983 = vadd.f32 %v981, %v211
    %v984 = vadd.f32 %v982, %v212
    %v985 = vmul.f32 %v983, %v984
    %v986 = vmul.f32 %v983, %v860
    %987 = vrot.lane.b32.xlu0 %v986, 64
    %v988 = vpop.permute.xlu0 %987
    %v989 = vadd.f32 %v985, %v988
    %990 = vrot.lane.b32.xlu0 %v989, 64
    %v991 = vpop.permute.xlu0 %990
    %v992 = vtanh.pop %v989
    %993 = vrot.lane.b32.xlu0 %v984, 64
    %v994 = vpop.permute.xlu0 %993
    %v995 = vmul.f32 %v994, %v992
    %v996 = vsel %vm213, %v995, %v932
    %v997 = vpack.c.bf16 %v996, %v996
    %998 = vmatprep.subr.bf16.mxu0 %v433
    %999 = vmatpush1.bf16.msra.mxu0 %v432
    %1000 = vmatprep.subr.bf16.mxu0 %v431
    %1001 = vmatpush1.bf16.msra.mxu0 %v430
    %1002 = vmatprep.subr.bf16.mxu0 %v429
    %1003 = vmatpush1.bf16.msra.mxu0 %v428
    %1004 = vmatprep.subr.bf16.mxu0 %v427
    %1005 = vmatpush1.bf16.msra.mxu0 %v426
    %1006 = vmatprep.subr.bf16.mxu0 %v425
    %1007 = vmatpush1.bf16.msra.mxu0 %v424
    %1008 = vmatprep.subr.bf16.mxu0 %v423
    %1009 = vmatpush1.bf16.msra.mxu0 %v422
    %1010 = vmatprep.subr.bf16.mxu0 %v421
    %1011 = vmatpush1.bf16.msra.mxu0 %v420
    %1012 = vmatprep.subr.bf16.mxu0 %v419
    %1013 = vmatpush1.bf16.msra.mxu0 %v418
    %1014 = vmatprep.subr.bf16.mxu0 0
    %1015 = vmatpush2.bf16.msra.mxu0 0
    %1016 = vmatprep.subr.bf16.mxu0 0
    %1017 = vmatpush2.bf16.msra.mxu0 0
    %1018 = vmatprep.subr.bf16.mxu0 0
    %1019 = vmatpush2.bf16.msra.mxu0 0
    %1020 = vmatprep.subr.bf16.mxu0 0
    %1021 = vmatpush2.bf16.msra.mxu0 0
    %1022 = vmatprep.subr.bf16.mxu0 0
    %1023 = vmatpush2.bf16.msra.mxu0 0
    %1024 = vmatprep.subr.bf16.mxu0 0
    %1025 = vmatpush2.bf16.msra.mxu0 0
    %1026 = vmatprep.subr.bf16.mxu0 0
    %1027 = vmatpush2.bf16.msra.mxu0 0
    %1028 = vmatprep.subr.bf16.mxu0 0
    %1029 = vmatpush2.bf16.msra.mxu0 0
    %1030 = vmatprep.mubr.bf16.mxu0 0
    %1031 = vmatmul.mubr.bf16.gmra.mxu0 %v997
    %v1032 = vpop.f32.mrf.mxu0
    %v1033 = vadd.f32 %v363, %v1032
    %v1034 = vpop.f32.mrf.mxu0
    %v1035 = vadd.f32 %v367, %v1034
    %v1036 = vpop.f32.mrf.mxu0
    %v1037 = vpop.f32.mrf.mxu0
    %1038 = vdwg.mxu0
    %v1039 = vmul.f32 %v1033, %v209
    %v1040 = vmul.f32 %v1035, %v210
    %v1041 = vtanh.pop %v1039
    %v1042 = vtanh.pop %v1040
    %v1043 = vmul.f32 %v1041, %v209
    %v1044 = vmul.f32 %v1042, %v210
    %v1045 = vadd.f32 %v1043, %v211
    %v1046 = vadd.f32 %v1044, %v212
    %v1047 = vmul.f32 %v1045, %v1046
    %v1048 = vmul.f32 %v1045, %v928
    %1049 = vrot.lane.b32.xlu0 %v1048, 64
    %v1050 = vpop.permute.xlu0 %1049
    %v1051 = vadd.f32 %v1047, %v1050
    %1052 = vrot.lane.b32.xlu0 %v1051, 64
    %v1053 = vpop.permute.xlu0 %1052
    %v1054 = vtanh.pop %v1051
    %1055 = vrot.lane.b32.xlu0 %v1054, 64
    %v1056 = vpop.permute.xlu0 %1055
    %v1057 = vmul.f32 %v1046, %v1056
    %v1058 = vpack.c.bf16 %v995, %v995
    %1059 = vmatprep.subr.bf16.mxu0 %v278
    %1060 = vmatpush1.bf16.msra.mxu0 %v277
    %1061 = vmatprep.subr.bf16.mxu0 %v276
    %1062 = vmatpush1.bf16.msra.mxu0 %v275
    %1063 = vmatprep.subr.bf16.mxu0 %v274
    %1064 = vmatpush1.bf16.msra.mxu0 %v273
    %1065 = vmatprep.subr.bf16.mxu0 %v272
    %1066 = vmatpush1.bf16.msra.mxu0 %v271
    %1067 = vmatprep.subr.bf16.mxu0 %v270
    %1068 = vmatpush1.bf16.msra.mxu0 %v269
    %1069 = vmatprep.subr.bf16.mxu0 %v268
    %1070 = vmatpush1.bf16.msra.mxu0 %v267
    %1071 = vmatprep.subr.bf16.mxu0 %v266
    %1072 = vmatpush1.bf16.msra.mxu0 %v265
    %1073 = vmatprep.subr.bf16.mxu0 %v264
    %1074 = vmatpush1.bf16.msra.mxu0 %v263
    %1075 = vmatprep.subr.bf16.mxu0 0
    %1076 = vmatpush2.bf16.msra.mxu0 0
    %1077 = vmatprep.subr.bf16.mxu0 0
    %1078 = vmatpush2.bf16.msra.mxu0 0
    %1079 = vmatprep.subr.bf16.mxu0 0
    %1080 = vmatpush2.bf16.msra.mxu0 0
    %1081 = vmatprep.subr.bf16.mxu0 0
    %1082 = vmatpush2.bf16.msra.mxu0 0
    %1083 = vmatprep.subr.bf16.mxu0 0
    %1084 = vmatpush2.bf16.msra.mxu0 0
    %1085 = vmatprep.subr.bf16.mxu0 0
    %1086 = vmatpush2.bf16.msra.mxu0 0
    %1087 = vmatprep.subr.bf16.mxu0 0
    %1088 = vmatpush2.bf16.msra.mxu0 0
    %1089 = vmatprep.subr.bf16.mxu0 0
    %1090 = vmatpush2.bf16.msra.mxu0 0
    %1091 = vmatprep.mubr.bf16.mxu0 0
    %1092 = vmatmul.mubr.bf16.gmra.mxu0 %v1058
    %v1093 = vpop.f32.mrf.mxu0
    %v1094 = vadd.f32 0.0, %v1093
    %v1095 = vpop.f32.mrf.mxu0
    %v1096 = vadd.f32 0.0, %v1095
    %v1097 = vpop.f32.mrf.mxu0
    %v1098 = vpop.f32.mrf.mxu0
    %1099 = vdwg.mxu0
    %v1102 = vrot.slane %v1094, 4
    %v1103 = vrot.slane %v1096, 4
    %v1106 = vadd.f32 %v155, %v1102
    %v1107 = vadd.f32 %v157, %v1103
    %v1108 = vmul.f32 %v1106, %v209
    %v1109 = vmul.f32 %v1107, %v210
    %v1110 = vtanh.pop %v1108
    %v1111 = vtanh.pop %v1109
    %v1112 = vmul.f32 %v1110, %v209
    %v1113 = vmul.f32 %v1111, %v210
    %v1114 = vadd.f32 %v1112, %v211
    %v1115 = vadd.f32 %v1113, %v212
    %v1116 = vmul.f32 %v1114, %v1115
    %v1118 = vrot.slane %v991, 4
    %v1120 = vmul.f32 %v1114, %v1118
    %v1122 = vrot.slane %v1120, 4
    %1124 = vrot.lane.b32.xlu0 %v1122, 64
    %v1125 = vpop.permute.xlu0 %1124
    %v1127 = vrot.slane %v1125, 4
    %v1129 = vadd.f32 %v1116, %v1127
    %v1131 = vrot.slane %v1129, 4
    %1133 = vrot.lane.b32.xlu0 %v1131, 64
    %v1134 = vpop.permute.xlu0 %1133
    %v1135 = vtanh.pop %v1129
    %v1137 = vrot.slane %v1115, 4
    %1139 = vrot.lane.b32.xlu0 %v1137, 64
    %v1140 = vpop.permute.xlu0 %1139
    %v1142 = vrot.slane %v1135, 4
    %v1144 = vmul.f32 %v1140, %v1142
    %v1145 = vsel %vm213, %v1144, %v1057
    %v1146 = vpack.c.bf16 %v1145, %v1145
    %1147 = vmatprep.subr.bf16.mxu0 %v433
    %1148 = vmatpush1.bf16.msra.mxu0 %v432
    %1149 = vmatprep.subr.bf16.mxu0 %v431
    %1150 = vmatpush1.bf16.msra.mxu0 %v430
    %1151 = vmatprep.subr.bf16.mxu0 %v429
    %1152 = vmatpush1.bf16.msra.mxu0 %v428
    %1153 = vmatprep.subr.bf16.mxu0 %v427
    %1154 = vmatpush1.bf16.msra.mxu0 %v426
    %1155 = vmatprep.subr.bf16.mxu0 %v425
    %1156 = vmatpush1.bf16.msra.mxu0 %v424
    %1157 = vmatprep.subr.bf16.mxu0 %v423
    %1158 = vmatpush1.bf16.msra.mxu0 %v422
    %1159 = vmatprep.subr.bf16.mxu0 %v421
    %1160 = vmatpush1.bf16.msra.mxu0 %v420
    %1161 = vmatprep.subr.bf16.mxu0 %v419
    %1162 = vmatpush1.bf16.msra.mxu0 %v418
    %1163 = vmatprep.subr.bf16.mxu0 0
    %1164 = vmatpush2.bf16.msra.mxu0 0
    %1165 = vmatprep.subr.bf16.mxu0 0
    %1166 = vmatpush2.bf16.msra.mxu0 0
    %1167 = vmatprep.subr.bf16.mxu0 0
    %1168 = vmatpush2.bf16.msra.mxu0 0
    %1169 = vmatprep.subr.bf16.mxu0 0
    %1170 = vmatpush2.bf16.msra.mxu0 0
    %1171 = vmatprep.subr.bf16.mxu0 0
    %1172 = vmatpush2.bf16.msra.mxu0 0
    %1173 = vmatprep.subr.bf16.mxu0 0
    %1174 = vmatpush2.bf16.msra.mxu0 0
    %1175 = vmatprep.subr.bf16.mxu0 0
    %1176 = vmatpush2.bf16.msra.mxu0 0
    %1177 = vmatprep.subr.bf16.mxu0 0
    %1178 = vmatpush2.bf16.msra.mxu0 0
    %1179 = vmatprep.mubr.bf16.mxu0 0
    %1180 = vmatmul.mubr.bf16.gmra.mxu0 %v1146
    %v1181 = vpop.f32.mrf.mxu0
    %v1182 = vadd.f32 %v363, %v1181
    %v1183 = vpop.f32.mrf.mxu0
    %v1184 = vadd.f32 %v367, %v1183
    %v1185 = vpop.f32.mrf.mxu0
    %v1186 = vpop.f32.mrf.mxu0
    %1187 = vdwg.mxu0
    %v1188 = vmul.f32 %v1182, %v209
    %v1189 = vmul.f32 %v1184, %v210
    %v1190 = vtanh.pop %v1188
    %v1191 = vtanh.pop %v1189
    %v1192 = vmul.f32 %v1190, %v209
    %v1193 = vmul.f32 %v1191, %v210
    %v1194 = vadd.f32 %v1192, %v211
    %v1195 = vadd.f32 %v1193, %v212
    %v1196 = vmul.f32 %v1194, %v1195
    %v1197 = vmul.f32 %v1194, %v1053
    %1198 = vrot.lane.b32.xlu0 %v1197, 64
    %v1199 = vpop.permute.xlu0 %1198
    %v1200 = vadd.f32 %v1196, %v1199
    %1201 = vrot.lane.b32.xlu0 %v1200, 64
    %v1202 = vpop.permute.xlu0 %1201
    %v1203 = vtanh.pop %v1200
    %1204 = vrot.lane.b32.xlu0 %v1203, 64
    %v1205 = vpop.permute.xlu0 %1204
    %v1206 = vmul.f32 %v1195, %v1205
    %v1207 = vpack.c.bf16 %v1144, %v1144
    %1208 = vmatprep.subr.bf16.mxu0 %v278
    %1209 = vmatpush1.bf16.msra.mxu0 %v277
    %1210 = vmatprep.subr.bf16.mxu0 %v276
    %1211 = vmatpush1.bf16.msra.mxu0 %v275
    %1212 = vmatprep.subr.bf16.mxu0 %v274
    %1213 = vmatpush1.bf16.msra.mxu0 %v273
    %1214 = vmatprep.subr.bf16.mxu0 %v272
    %1215 = vmatpush1.bf16.msra.mxu0 %v271
    %1216 = vmatprep.subr.bf16.mxu0 %v270
    %1217 = vmatpush1.bf16.msra.mxu0 %v269
    %1218 = vmatprep.subr.bf16.mxu0 %v268
    %1219 = vmatpush1.bf16.msra.mxu0 %v267
    %1220 = vmatprep.subr.bf16.mxu0 %v266
    %1221 = vmatpush1.bf16.msra.mxu0 %v265
    %1222 = vmatprep.subr.bf16.mxu0 %v264
    %1223 = vmatpush1.bf16.msra.mxu0 %v263
    %1224 = vmatprep.subr.bf16.mxu0 0
    %1225 = vmatpush2.bf16.msra.mxu0 0
    %1226 = vmatprep.subr.bf16.mxu0 0
    %1227 = vmatpush2.bf16.msra.mxu0 0
    %1228 = vmatprep.subr.bf16.mxu0 0
    %1229 = vmatpush2.bf16.msra.mxu0 0
    %1230 = vmatprep.subr.bf16.mxu0 0
    %1231 = vmatpush2.bf16.msra.mxu0 0
    %1232 = vmatprep.subr.bf16.mxu0 0
    %1233 = vmatpush2.bf16.msra.mxu0 0
    %1234 = vmatprep.subr.bf16.mxu0 0
    %1235 = vmatpush2.bf16.msra.mxu0 0
    %1236 = vmatprep.subr.bf16.mxu0 0
    %1237 = vmatpush2.bf16.msra.mxu0 0
    %1238 = vmatprep.subr.bf16.mxu0 0
    %1239 = vmatpush2.bf16.msra.mxu0 0
    %1240 = vmatprep.mubr.bf16.mxu0 0
    %1241 = vmatmul.mubr.bf16.gmra.mxu0 %v1207
    %v1242 = vpop.f32.mrf.mxu0
    %v1243 = vadd.f32 0.0, %v1242
    %v1244 = vpop.f32.mrf.mxu0
    %v1245 = vadd.f32 0.0, %v1244
    %v1246 = vpop.f32.mrf.mxu0
    %v1247 = vpop.f32.mrf.mxu0
    %1248 = vdwg.mxu0
    %v1249 = vadd.f32 %v159, %v1243
    %v1250 = vadd.f32 %v161, %v1245
    %v1251 = vmul.f32 %v1249, %v209
    %v1252 = vmul.f32 %v1250, %v210
    %v1253 = vtanh.pop %v1251
    %v1254 = vtanh.pop %v1252
    %v1255 = vmul.f32 %v1253, %v209
    %v1256 = vmul.f32 %v1254, %v210
    %v1257 = vadd.f32 %v1255, %v211
    %v1258 = vadd.f32 %v1256, %v212
    %v1259 = vmul.f32 %v1257, %v1258
    %v1260 = vmul.f32 %v1257, %v1134
    %1261 = vrot.lane.b32.xlu0 %v1260, 64
    %v1262 = vpop.permute.xlu0 %1261
    %v1263 = vadd.f32 %v1259, %v1262
    %1264 = vrot.lane.b32.xlu0 %v1263, 64
    %v1265 = vpop.permute.xlu0 %1264
    %v1266 = vtanh.pop %v1263
    %1267 = vrot.lane.b32.xlu0 %v1258, 64
    %v1268 = vpop.permute.xlu0 %1267
    %v1269 = vmul.f32 %v1268, %v1266
    %v1270 = vsel %vm213, %v1269, %v1206
    %v1271 = vpack.c.bf16 %v1270, %v1270
    %1272 = vmatprep.subr.bf16.mxu0 %v433
    %1273 = vmatpush1.bf16.msra.mxu0 %v432
    %1274 = vmatprep.subr.bf16.mxu0 %v431
    %1275 = vmatpush1.bf16.msra.mxu0 %v430
    %1276 = vmatprep.subr.bf16.mxu0 %v429
    %1277 = vmatpush1.bf16.msra.mxu0 %v428
    %1278 = vmatprep.subr.bf16.mxu0 %v427
    %1279 = vmatpush1.bf16.msra.mxu0 %v426
    %1280 = vmatprep.subr.bf16.mxu0 %v425
    %1281 = vmatpush1.bf16.msra.mxu0 %v424
    %1282 = vmatprep.subr.bf16.mxu0 %v423
    %1283 = vmatpush1.bf16.msra.mxu0 %v422
    %1284 = vmatprep.subr.bf16.mxu0 %v421
    %1285 = vmatpush1.bf16.msra.mxu0 %v420
    %1286 = vmatprep.subr.bf16.mxu0 %v419
    %1287 = vmatpush1.bf16.msra.mxu0 %v418
    %1288 = vmatprep.subr.bf16.mxu0 0
    %1289 = vmatpush2.bf16.msra.mxu0 0
    %1290 = vmatprep.subr.bf16.mxu0 0
    %1291 = vmatpush2.bf16.msra.mxu0 0
    %1292 = vmatprep.subr.bf16.mxu0 0
    %1293 = vmatpush2.bf16.msra.mxu0 0
    %1294 = vmatprep.subr.bf16.mxu0 0
    %1295 = vmatpush2.bf16.msra.mxu0 0
    %1296 = vmatprep.subr.bf16.mxu0 0
    %1297 = vmatpush2.bf16.msra.mxu0 0
    %1298 = vmatprep.subr.bf16.mxu0 0
    %1299 = vmatpush2.bf16.msra.mxu0 0
    %1300 = vmatprep.subr.bf16.mxu0 0
    %1301 = vmatpush2.bf16.msra.mxu0 0
    %1302 = vmatprep.subr.bf16.mxu0 0
    %1303 = vmatpush2.bf16.msra.mxu0 0
    %1304 = vmatprep.mubr.bf16.mxu0 0
    %1305 = vmatmul.mubr.bf16.gmra.mxu0 %v1271
    %v1306 = vpop.f32.mrf.mxu0
    %v1307 = vadd.f32 %v363, %v1306
    %v1308 = vpop.f32.mrf.mxu0
    %v1309 = vadd.f32 %v367, %v1308
    %v1310 = vpop.f32.mrf.mxu0
    %v1311 = vpop.f32.mrf.mxu0
    %1312 = vdwg.mxu0
    %v1313 = vmul.f32 %v1307, %v209
    %v1314 = vmul.f32 %v1309, %v210
    %v1315 = vtanh.pop %v1313
    %v1316 = vtanh.pop %v1314
    %v1317 = vmul.f32 %v1315, %v209
    %v1318 = vmul.f32 %v1316, %v210
    %v1319 = vadd.f32 %v1317, %v211
    %v1320 = vadd.f32 %v1318, %v212
    %v1321 = vmul.f32 %v1319, %v1320
    %v1322 = vmul.f32 %v1319, %v1202
    %1323 = vrot.lane.b32.xlu0 %v1322, 64
    %v1324 = vpop.permute.xlu0 %1323
    %v1325 = vadd.f32 %v1321, %v1324
    %1326 = vrot.lane.b32.xlu0 %v1325, 64
    %v1327 = vpop.permute.xlu0 %1326
    %v1328 = vtanh.pop %v1325
    %1329 = vrot.lane.b32.xlu0 %v1328, 64
    %v1330 = vpop.permute.xlu0 %1329
    %v1331 = vmul.f32 %v1320, %v1330
    %v1332 = vpack.c.bf16 %v1269, %v1269
    %1333 = vmatprep.subr.bf16.mxu0 %v278
    %1334 = vmatpush1.bf16.msra.mxu0 %v277
    %1335 = vmatprep.subr.bf16.mxu0 %v276
    %1336 = vmatpush1.bf16.msra.mxu0 %v275
    %1337 = vmatprep.subr.bf16.mxu0 %v274
    %1338 = vmatpush1.bf16.msra.mxu0 %v273
    %1339 = vmatprep.subr.bf16.mxu0 %v272
    %1340 = vmatpush1.bf16.msra.mxu0 %v271
    %1341 = vmatprep.subr.bf16.mxu0 %v270
    %1342 = vmatpush1.bf16.msra.mxu0 %v269
    %1343 = vmatprep.subr.bf16.mxu0 %v268
    %1344 = vmatpush1.bf16.msra.mxu0 %v267
    %1345 = vmatprep.subr.bf16.mxu0 %v266
    %1346 = vmatpush1.bf16.msra.mxu0 %v265
    %1347 = vmatprep.subr.bf16.mxu0 %v264
    %1348 = vmatpush1.bf16.msra.mxu0 %v263
    %1349 = vmatprep.subr.bf16.mxu0 0
    %1350 = vmatpush2.bf16.msra.mxu0 0
    %1351 = vmatprep.subr.bf16.mxu0 0
    %1352 = vmatpush2.bf16.msra.mxu0 0
    %1353 = vmatprep.subr.bf16.mxu0 0
    %1354 = vmatpush2.bf16.msra.mxu0 0
    %1355 = vmatprep.subr.bf16.mxu0 0
    %1356 = vmatpush2.bf16.msra.mxu0 0
    %1357 = vmatprep.subr.bf16.mxu0 0
    %1358 = vmatpush2.bf16.msra.mxu0 0
    %1359 = vmatprep.subr.bf16.mxu0 0
    %1360 = vmatpush2.bf16.msra.mxu0 0
    %1361 = vmatprep.subr.bf16.mxu0 0
    %1362 = vmatpush2.bf16.msra.mxu0 0
    %1363 = vmatprep.subr.bf16.mxu0 0
    %1364 = vmatpush2.bf16.msra.mxu0 0
    %1365 = vmatprep.mubr.bf16.mxu0 0
    %1366 = vmatmul.mubr.bf16.gmra.mxu0 %v1332
    %v1367 = vpop.f32.mrf.mxu0
    %v1368 = vadd.f32 0.0, %v1367
    %v1369 = vpop.f32.mrf.mxu0
    %v1370 = vadd.f32 0.0, %v1369
    %v1371 = vpop.f32.mrf.mxu0
    %v1372 = vpop.f32.mrf.mxu0
    %1373 = vdwg.mxu0
    %v1376 = vrot.slane %v1368, 4
    %v1377 = vrot.slane %v1370, 4
    %v1380 = vadd.f32 %v159, %v1376
    %v1381 = vadd.f32 %v161, %v1377
    %v1382 = vmul.f32 %v1380, %v209
    %v1383 = vmul.f32 %v1381, %v210
    %v1384 = vtanh.pop %v1382
    %v1385 = vtanh.pop %v1383
    %v1386 = vmul.f32 %v1384, %v209
    %v1387 = vmul.f32 %v1385, %v210
    %v1388 = vadd.f32 %v1386, %v211
    %v1389 = vadd.f32 %v1387, %v212
    %v1390 = vmul.f32 %v1388, %v1389
    %v1392 = vrot.slane %v1265, 4
    %v1394 = vmul.f32 %v1388, %v1392
    %v1396 = vrot.slane %v1394, 4
    %1398 = vrot.lane.b32.xlu0 %v1396, 64
    %v1399 = vpop.permute.xlu0 %1398
    %v1401 = vrot.slane %v1399, 4
    %v1403 = vadd.f32 %v1390, %v1401
    %v1404 = vtanh.pop %v1403
    %v1406 = vrot.slane %v1389, 4
    %1408 = vrot.lane.b32.xlu0 %v1406, 64
    %v1409 = vpop.permute.xlu0 %1408
    %v1411 = vrot.slane %v1404, 4
    %v1413 = vmul.f32 %v1409, %v1411
    %v1414 = vsel %vm213, %v1413, %v1331
    %v1415 = vpack.c.bf16 %v1414, %v1414
    %1416 = vmatprep.subr.bf16.mxu0 %v433
    %1417 = vmatpush1.bf16.msra.mxu0 %v432
    %1418 = vmatprep.subr.bf16.mxu0 %v431
    %1419 = vmatpush1.bf16.msra.mxu0 %v430
    %1420 = vmatprep.subr.bf16.mxu0 %v429
    %1421 = vmatpush1.bf16.msra.mxu0 %v428
    %1422 = vmatprep.subr.bf16.mxu0 %v427
    %1423 = vmatpush1.bf16.msra.mxu0 %v426
    %1424 = vmatprep.subr.bf16.mxu0 %v425
    %1425 = vmatpush1.bf16.msra.mxu0 %v424
    %1426 = vmatprep.subr.bf16.mxu0 %v423
    %1427 = vmatpush1.bf16.msra.mxu0 %v422
    %1428 = vmatprep.subr.bf16.mxu0 %v421
    %1429 = vmatpush1.bf16.msra.mxu0 %v420
    %1430 = vmatprep.subr.bf16.mxu0 %v419
    %1431 = vmatpush1.bf16.msra.mxu0 %v418
    %1432 = vmatprep.subr.bf16.mxu0 0
    %1433 = vmatpush2.bf16.msra.mxu0 0
    %1434 = vmatprep.subr.bf16.mxu0 0
    %1435 = vmatpush2.bf16.msra.mxu0 0
    %1436 = vmatprep.subr.bf16.mxu0 0
    %1437 = vmatpush2.bf16.msra.mxu0 0
    %1438 = vmatprep.subr.bf16.mxu0 0
    %1439 = vmatpush2.bf16.msra.mxu0 0
    %1440 = vmatprep.subr.bf16.mxu0 0
    %1441 = vmatpush2.bf16.msra.mxu0 0
    %1442 = vmatprep.subr.bf16.mxu0 0
    %1443 = vmatpush2.bf16.msra.mxu0 0
    %1444 = vmatprep.subr.bf16.mxu0 0
    %1445 = vmatpush2.bf16.msra.mxu0 0
    %1446 = vmatprep.subr.bf16.mxu0 0
    %1447 = vmatpush2.bf16.msra.mxu0 0
    %1448 = vmatprep.mubr.bf16.mxu0 0
    %1449 = vmatmul.mubr.bf16.gmra.mxu0 %v1415
    %v1450 = vpop.f32.mrf.mxu0
    %v1451 = vadd.f32 %v363, %v1450
    %v1452 = vpop.f32.mrf.mxu0
    %v1453 = vadd.f32 %v367, %v1452
    %v1454 = vpop.f32.mrf.mxu0
    %v1455 = vpop.f32.mrf.mxu0
    %1456 = vdwg.mxu0
    %v1457 = vmul.f32 %v1451, %v209
    %v1458 = vmul.f32 %v1453, %v210
    %v1459 = vtanh.pop %v1457
    %v1460 = vtanh.pop %v1458
    %v1461 = vmul.f32 %v1459, %v209
    %v1462 = vmul.f32 %v1460, %v210
    %v1463 = vadd.f32 %v1461, %v211
    %v1464 = vadd.f32 %v1462, %v212
    %v1465 = vmul.f32 %v1463, %v1464
    %v1466 = vmul.f32 %v1463, %v1327
    %1467 = vrot.lane.b32.xlu0 %v1466, 64
    %v1468 = vpop.permute.xlu0 %1467
    %v1469 = vadd.f32 %v1465, %v1468
    %v1470 = vtanh.pop %v1469
    %1471 = vrot.lane.b32.xlu0 %v1470, 64
    %v1472 = vpop.permute.xlu0 %1471
    %v1473 = vmul.f32 %v1464, %v1472
    %v1474 = vld [vmem:[%s10] sm:$0xff]
    %v1475 = vld [vmem:[%s10 + $0x8] sm:$0xff]
    %v1476 = vld [vmem:[%s10 + $0x10] sm:$0xff]
    %v1477 = vld [vmem:[%s10 + $0x18] sm:$0xff]
    %v1478 = vld [vmem:[%s10 + $0x20] sm:$0xff]
    %v1479 = vld [vmem:[%s10 + $0x28] sm:$0xff]
    %v1480 = vld [vmem:[%s10 + $0x30] sm:$0xff]
    %v1481 = vld [vmem:[%s10 + $0x38] sm:$0xff]
    %v1482 = vld [vmem:[%s10 + $0x40] sm:$0xff]
    %v1483 = vld [vmem:[%s10 + $0x48] sm:$0xff]
    %v1484 = vld [vmem:[%s10 + $0x50] sm:$0xff]
    %v1485 = vld [vmem:[%s10 + $0x58] sm:$0xff]
    %v1486 = vld [vmem:[%s10 + $0x60] sm:$0xff]
    %v1487 = vld [vmem:[%s10 + $0x68] sm:$0xff]
    %v1488 = vld [vmem:[%s10 + $0x70] sm:$0xff]
    %v1489 = vld [vmem:[%s10 + $0x78] sm:$0xff]
    %v1490 = vld [vmem:[%s11] sm:$0x1]
    %v1492 = vlaneseq
    %v1493 = vshrl.u32 %v1492, 7
    %v1494 = vsub.s32 0, %v1493
    %v1495 = vrot.slane %v1490, %v1494
    %1497 = vmatprep.subr.mxu0 0.0
    %1498 = vmatpush1.msra.mxu0 %v1489
    %1499 = vmatprep.subr.mxu0 0.0
    %1500 = vmatpush1.msra.mxu0 %v1488
    %1501 = vmatprep.subr.mxu0 0.0
    %1502 = vmatpush1.msra.mxu0 %v1487
    %1503 = vmatprep.subr.mxu0 0.0
    %1504 = vmatpush1.msra.mxu0 %v1486
    %1505 = vmatprep.subr.mxu0 0.0
    %1506 = vmatpush1.msra.mxu0 %v1485
    %1507 = vmatprep.subr.mxu0 0.0
    %1508 = vmatpush1.msra.mxu0 %v1484
    %1509 = vmatprep.subr.mxu0 0.0
    %1510 = vmatpush1.msra.mxu0 %v1483
    %1511 = vmatprep.subr.mxu0 0.0
    %1512 = vmatpush1.msra.mxu0 %v1482
    %1513 = vmatprep.subr.mxu0 0.0
    %1514 = vmatpush1.msra.mxu0 %v1481
    %1515 = vmatprep.subr.mxu0 0.0
    %1516 = vmatpush1.msra.mxu0 %v1480
    %1517 = vmatprep.subr.mxu0 0.0
    %1518 = vmatpush1.msra.mxu0 %v1479
    %1519 = vmatprep.subr.mxu0 0.0
    %1520 = vmatpush1.msra.mxu0 %v1478
    %1521 = vmatprep.subr.mxu0 0.0
    %1522 = vmatpush1.msra.mxu0 %v1477
    %1523 = vmatprep.subr.mxu0 0.0
    %1524 = vmatpush1.msra.mxu0 %v1476
    %1525 = vmatprep.subr.mxu0 0.0
    %1526 = vmatpush1.msra.mxu0 %v1475
    %1527 = vmatprep.subr.mxu0 0.0
    %1528 = vmatpush1.msra.mxu0 %v1474
    %1529 = vmatprep.subr.mxu0 0.0
    %1530 = vmatpush2.msra.mxu0 0.0
    %1531 = vmatprep.subr.mxu0 0.0
    %1532 = vmatpush2.msra.mxu0 0.0
    %1533 = vmatprep.subr.mxu0 0.0
    %1534 = vmatpush2.msra.mxu0 0.0
    %1535 = vmatprep.subr.mxu0 0.0
    %1536 = vmatpush2.msra.mxu0 0.0
    %1537 = vmatprep.subr.mxu0 0.0
    %1538 = vmatpush2.msra.mxu0 0.0
    %1539 = vmatprep.subr.mxu0 0.0
    %1540 = vmatpush2.msra.mxu0 0.0
    %1541 = vmatprep.subr.mxu0 0.0
    %1542 = vmatpush2.msra.mxu0 0.0
    %1543 = vmatprep.subr.mxu0 0.0
    %1544 = vmatpush2.msra.mxu0 0.0
    %1545 = vmatprep.subr.mxu0 0.0
    %1546 = vmatpush2.msra.mxu0 0.0
    %1547 = vmatprep.subr.mxu0 0.0
    %1548 = vmatpush2.msra.mxu0 0.0
    %1549 = vmatprep.subr.mxu0 0.0
    %1550 = vmatpush2.msra.mxu0 0.0
    %1551 = vmatprep.subr.mxu0 0.0
    %1552 = vmatpush2.msra.mxu0 0.0
    %1553 = vmatprep.subr.mxu0 0.0
    %1554 = vmatpush2.msra.mxu0 0.0
    %1555 = vmatprep.subr.mxu0 0.0
    %1556 = vmatpush2.msra.mxu0 0.0
    %1557 = vmatprep.subr.mxu0 0.0
    %1558 = vmatpush2.msra.mxu0 0.0
    %1559 = vmatprep.subr.mxu0 0.0
    %1560 = vmatpush2.msra.mxu0 0.0
    %1561 = vmatprep.mubr.f32.mxu0 0.0
    %1562 = vmatmul.mubr.f32.gmra.mxu0 %v1473
    %v1563 = vpop.f32.mrf.mxu0
    %v1564 = vadd.f32 %v1495, %v1563
    %v1565 = vpop.f32.mrf.mxu0
    %1566 = vdwg.mxu0
    %vm1567 = vcmp.lt.s32.totalorder %v201, 7
    %vm1568 = vcmp.ge.s32.totalorder %v201, 8
    %vm1569 = vcmp.lt.s32.totalorder %v201, 10
    %vm1570 = vmand %vm1568, %vm1569
    %v1571 = vsel %vm1567, 1, 0
    %v1572 = vcvt.s32.f32 %v1571
    %v1573 = vsel %vm1570, 1, 0
    %v1574 = vcvt.s32.f32 %v1573
    %v1575 = vmul.f32 %v1564, %v1572
    %vm1576 = vcmask 125952
    %v1577 = vsel %vm1576, %v1575, 0.0
    %1578 = vadd.xlane.f32.xlu0 %v1577
    %v1579 = vpop.xlane.xlu0 %1578
    %v1580 = vrot.slane %v1579, 4
    %v1581 = vadd.f32 %v1579, %v1580
    %v1582 = vrot.slane %v1581, 2
    %v1583 = vadd.f32 %v1581, %v1582
    %v1584 = vrot.slane %v1583, 1
    %v1585 = vadd.f32 %v1583, %v1584
    %s1586 = vtos %v1585
    %v1587 = vrcp.pop 28.0
    %s1588 = vtos %v1587
    %s1589 = smul.f32 %s1586, %s1588
    %v1590 = vmul.f32 %v1564, %v1574
    %v1591 = vsel %vm1576, %v1590, 0.0
    %1592 = vadd.xlane.f32.xlu0 %v1591
    %v1593 = vpop.xlane.xlu0 %1592
    %v1594 = vrot.slane %v1593, 4
    %v1595 = vadd.f32 %v1593, %v1594
    %v1596 = vrot.slane %v1595, 2
    %v1597 = vadd.f32 %v1595, %v1596
    %v1598 = vrot.slane %v1597, 1
    %v1599 = vadd.f32 %v1597, %v1598
    %s1600 = vtos %v1599
    %v1601 = vrcp.pop 8.0
    %s1602 = vtos %v1601
    %s1603 = smul.f32 %s1600, %s1602
    %v1604 = vstv %s1589
    %v1605 = vsub.f32 %v1564, %v1604
    %v1606 = vmul.f32 %v1605, %v1605
    %v1607 = vmul.f32 %v1606, %v1572
    %v1608 = vsel %vm1576, %v1607, 0.0
    %1609 = vadd.xlane.f32.xlu0 %v1608
    %v1610 = vpop.xlane.xlu0 %1609
    %v1611 = vrot.slane %v1610, 4
    %v1612 = vadd.f32 %v1610, %v1611
    %v1613 = vrot.slane %v1612, 2
    %v1614 = vadd.f32 %v1612, %v1613
    %v1615 = vrot.slane %v1614, 1
    %v1616 = vadd.f32 %v1614, %v1615
    %s1617 = vtos %v1616
    %v1618 = vrcp.pop 28.0
    %s1619 = vtos %v1618
    %s1620 = smul.f32 %s1617, %s1619
    %v1621 = vstv %s1603
    %v1622 = vsub.f32 %v1564, %v1621
    %v1623 = vmul.f32 %v1622, %v1622
    %v1624 = vmul.f32 %v1623, %v1574
    %v1625 = vsel %vm1576, %v1624, 0.0
    %1626 = vadd.xlane.f32.xlu0 %v1625
    %v1627 = vpop.xlane.xlu0 %1626
    %v1628 = vrot.slane %v1627, 4
    %v1629 = vadd.f32 %v1627, %v1628
    %v1630 = vrot.slane %v1629, 2
    %v1631 = vadd.f32 %v1629, %v1630
    %v1632 = vrot.slane %v1631, 1
    %v1633 = vadd.f32 %v1631, %v1632
    %s1634 = vtos %v1633
    %v1635 = vrcp.pop 8.0
    %s1636 = vtos %v1635
    %s1637 = smul.f32 %s1634, %s1636
    %s1638 = sadd.f32 %s1620, 1e-05
    %v1639 = vstv %s1638
    %v1640 = vrsqrt.pop %v1639
    %s1641 = vtos %v1640
    %s1642 = sadd.f32 %s1637, 1e-05
    %v1643 = vstv %s1642
    %v1644 = vrsqrt.pop %v1643
    %s1645 = vtos %v1644
    %v1646 = vsel %vm1567, %v1604, %v1621
    %v1647 = vstv %s1641
    %v1648 = vstv %s1645
    %v1649 = vsel %vm1567, %v1647, %v1648
    %v1650 = vsub.f32 %v1564, %v1646
    %v1651 = vmul.f32 %v1650, %v1649
    %v1652 = vadd.f32 %v1572, %v1574
    %v1653 = vmul.f32 %v1651, %v1652
    %1654 = vst.msk [vmem:[#allocation5] sm:$0xf] %vm1576, %v1653
    // Predicated region
    $region54: #{tpu_custom_call.1} parent=1 // pred_check
      _
    $region55: #{tpu_custom_call.1} parent=1 // pred_check_branch
      %1656 = sbr.rel (0) target = $region57
    $region56: #{tpu_custom_call.1} parent=1 // pred_region
      %s1658 = ssub.s32 64, 64
      %1659 = vsyncadd [#allocation4], %s1658
      %s1661 = sshll.u32 [#allocation5], 4
      %s1662 = int_to_ptr.vmem [resolvable:$true] %s1661
      %1664 = dma.vmem_to_hbm [thread:$0]  %s1662, 64, %s12, [#allocation4]
    $region57: #{tpu_custom_call.1} parent=1 // pred_fallthru
      _
    // Predicated region
    $region58: #{tpu_custom_call.1} parent=1 // pred_check
      _
    $region59: #{tpu_custom_call.1} parent=1 // pred_check_branch
      %1666 = sbr.rel (0) target = $region61
    $region60: #{tpu_custom_call.1} parent=1 // pred_region
      %1667 = dma.done [#allocation4], 64
    $region61: #{tpu_custom_call.1} parent=1 // pred_fallthru
      _
    %1668 = vsyncpa [#allocation3], 1
    %1669 = vsyncpa [#allocation4], 1

</llo_original>
